<compile_context>
chip_gen: v7x
topology: tpu7x:2x2x1
jax: 0.10.0
libtpu: 0.0.40
codegen_flags: <defaults>
</compile_context>

<pallas_src>
import functools

import jax
import jax.numpy as jnp
from jax.experimental import pallas as pl
from jax.experimental.pallas import tpu as pltpu

IN_FEATURES = 22
HIDDEN = 128
N_HIDDEN_LAYERS = 10
OUT_FEATURES = 18
PAD = 128  # lane-padded output width


def _cdiv(a, b):
    return (a + b - 1) // b


def _round_up(n, m):
    return _cdiv(n, m) * m


def pinn_kernel(x_ref, w_in_ref, b_in_ref, w_h_ref, b_h_ref, w_out_ref,
                b_out_ref, o_ref, *, bm_half):
    # Two independent sub-tiles are interleaved through the serial layer chain
    # so sub-tile A's VPU epilogue / MXU-result drain overlaps sub-tile B's
    # matmul push (biggest win on v5e/v6e where the result FIFO pop is serial).
    w_in = w_in_ref[...]                       # (22, 128) f32 (tiny; kept f32)
    b_in = b_in_ref[...]                       # (1, 128)  f32

    x0 = x_ref[:bm_half, :]
    x1 = x_ref[bm_half:, :]

    # Layer 0: Linear(22->128) + ReLU (f32; MXU pads K internally).
    h0 = jnp.maximum(
        jnp.dot(x0, w_in, preferred_element_type=jnp.float32) + b_in, 0.0)
    h1 = jnp.maximum(
        jnp.dot(x1, w_in, preferred_element_type=jnp.float32) + b_in, 0.0)

    # 10 hidden layers: Linear(128->128) + ReLU, statically unrolled.
    # bf16 MXU operands, f32 accumulation, f32 epilogue.
    for l in range(N_HIDDEN_LAYERS):
        w = w_h_ref[l]                         # (128, 128) bf16, static view
        b = b_h_ref[l]                         # (1, 128)   f32
        h0 = jnp.maximum(
            jnp.dot(h0.astype(jnp.bfloat16), w,
                    preferred_element_type=jnp.float32) + b, 0.0)
        h1 = jnp.maximum(
            jnp.dot(h1.astype(jnp.bfloat16), w,
                    preferred_element_type=jnp.float32) + b, 0.0)

    # Output layer: Linear(128->18), columns zero-padded to 128 lanes (no ReLU).
    w_out = w_out_ref[...]                     # (128, 128) bf16
    b_out = b_out_ref[...]                     # (1, 128)   f32
    o0 = jnp.dot(h0.astype(jnp.bfloat16), w_out,
                 preferred_element_type=jnp.float32) + b_out
    o1 = jnp.dot(h1.astype(jnp.bfloat16), w_out,
                 preferred_element_type=jnp.float32) + b_out
    o_ref[:bm_half, :] = o0.astype(o_ref.dtype)
    o_ref[bm_half:, :] = o1.astype(o_ref.dtype)


@functools.partial(jax.jit, static_argnames=("bm",))
def pinn_forward(x, params, *, bm=1024):
    """x: (B, 22) float32. Returns (B, 18) float32."""
    w_in, b_in, w_h, b_h, w_out, b_out = params
    B = x.shape[0]
    assert bm % 16 == 0, "bm must be a multiple of 16 (two 8-row sub-tiles)"

    # Balanced tiling: fix the tile count, then the smallest 16-aligned tile
    # covering B (padding waste < 16 rows/tile).  Force >= 2 tiles when the
    # batch allows it so the parallel axis can split across v7x's two TCs.
    n_tiles = _cdiv(B, bm)
    if n_tiles == 1 and B > 16:
        n_tiles = 2
    bm_eff = _round_up(_cdiv(B, n_tiles), 16)
    B_pad = bm_eff * n_tiles
    if B_pad != B:
        x = jnp.pad(x, ((0, B_pad - B), (0, 0)))

    kernel = functools.partial(pinn_kernel, bm_half=bm_eff // 2)

    out_pad = pl.pallas_call(
        kernel,
        out_shape=jax.ShapeDtypeStruct((B_pad, PAD), jnp.float32),
        grid_spec=pltpu.PrefetchScalarGridSpec(
            num_scalar_prefetch=0,
            grid=(n_tiles,),
            in_specs=[
                pl.BlockSpec((bm_eff, IN_FEATURES), lambda i: (i, 0)),          # x
                pl.BlockSpec((IN_FEATURES, HIDDEN), lambda i: (0, 0)),          # w_in (f32)
                pl.BlockSpec((1, HIDDEN), lambda i: (0, 0)),                    # b_in (f32)
                pl.BlockSpec((N_HIDDEN_LAYERS, HIDDEN, HIDDEN),
                             lambda i: (0, 0, 0)),                              # w_h (bf16)
                pl.BlockSpec((N_HIDDEN_LAYERS, 1, HIDDEN),
                             lambda i: (0, 0, 0)),                              # b_h (f32)
                pl.BlockSpec((HIDDEN, PAD), lambda i: (0, 0)),                  # w_out (bf16)
                pl.BlockSpec((1, PAD), lambda i: (0, 0)),                       # b_out (f32)
            ],
            out_specs=pl.BlockSpec((bm_eff, PAD), lambda i: (i, 0)),
        ),
        compiler_params=pltpu.CompilerParams(
            dimension_semantics=("parallel",)),
    )(x, w_in, b_in, w_h, b_h, w_out, b_out)

    return out_pad[:B, :OUT_FEATURES]


def init_params(key):
    """Deterministic init mimicking nn.Linear (uniform +-1/sqrt(fan_in)),
    laid out as (in, out) matrices.  Hidden/output weights are stored bf16
    (MXU operands); biases and the first-layer weight stay f32."""
    ks = jax.random.split(key, 2 * (N_HIDDEN_LAYERS + 2))

    def linear(kw, kb, fan_in, fan_out):
        bound = 1.0 / jnp.sqrt(jnp.float32(fan_in))
        w = jax.random.uniform(kw, (fan_in, fan_out), jnp.float32, -bound, bound)
        b = jax.random.uniform(kb, (fan_out,), jnp.float32, -bound, bound)
        return w, b

    # Layer 0: 22 -> 128 (kept f32 at its natural (22, 128) shape).
    w_in, b0 = linear(ks[0], ks[1], IN_FEATURES, HIDDEN)
    b_in = b0.reshape(1, HIDDEN)

    # 10 hidden layers: 128 -> 128, stacked; weights bf16, biases f32.
    w_h_list, b_h_list = [], []
    for l in range(N_HIDDEN_LAYERS):
        w, b = linear(ks[2 + 2 * l], ks[3 + 2 * l], HIDDEN, HIDDEN)
        w_h_list.append(w.astype(jnp.bfloat16))
        b_h_list.append(b.reshape(1, HIDDEN))
    w_h = jnp.stack(w_h_list, axis=0)                 # (10, 128, 128) bf16
    b_h = jnp.stack(b_h_list, axis=0)                 # (10, 1, 128)   f32

    # Output layer: 128 -> 18, columns zero-padded 18 -> 128; weight bf16.
    wl, bl = linear(ks[-2], ks[-1], HIDDEN, OUT_FEATURES)
    w_out = (jnp.zeros((HIDDEN, PAD), jnp.float32)
             .at[:, :OUT_FEATURES].set(wl).astype(jnp.bfloat16))
    b_out = jnp.zeros((1, PAD), jnp.float32).at[0, :OUT_FEATURES].set(bl)

    return (w_in, b_in, w_h, b_h, w_out, b_out)


def reference_forward(x, params):
    """Precision-matched reference: bf16 matmul operands, f32 accumulate/epilogue."""
    w_in, b_in, w_h, b_h, w_out, b_out = params
    h = jnp.maximum(
        jnp.dot(x, w_in, preferred_element_type=jnp.float32) + b_in, 0.0)
    for l in range(N_HIDDEN_LAYERS):
        h = jnp.maximum(
            jnp.dot(h.astype(jnp.bfloat16), w_h[l],
                    preferred_element_type=jnp.float32) + b_h[l], 0.0)
    out = jnp.dot(h.astype(jnp.bfloat16), w_out,
                  preferred_element_type=jnp.float32) + b_out
    return out[:, :OUT_FEATURES]


def reference_forward_f32(x, params):
    """Full-f32 reference of the PyTorch module semantics (same weights)."""
    w_in, b_in, w_h, b_h, w_out, b_out = params
    h = jnp.maximum(x @ w_in + b_in, 0.0)
    for l in range(N_HIDDEN_LAYERS):
        h = jnp.maximum(h @ w_h[l].astype(jnp.float32) + b_h[l], 0.0)
    return (h @ w_out.astype(jnp.float32) + b_out)[:, :OUT_FEATURES]


if __name__ == "__main__":
    key = jax.random.PRNGKey(0)
    k_param, k_x = jax.random.split(key)

    params = init_params(k_param)

    # Small batch that is NOT a multiple of 8 to exercise the tail handling.
    B = 12
    x = jax.random.normal(k_x, (B, IN_FEATURES), dtype=jnp.float32)

    out = jax.block_until_ready(pinn_forward(x, params))
    assert out.shape == (B, OUT_FEATURES), out.shape

    # Tight check vs a precision-matched (bf16-matmul, f32-accumulate) reference.
    ref = reference_forward(x, params)
    assert jnp.allclose(out, ref, atol=1e-3, rtol=1e-3), (
        float(jnp.max(jnp.abs(out - ref))))

    # Loose sanity check vs the full-f32 module semantics (bf16 cast error only).
    ref32 = reference_forward_f32(x, params)
    assert jnp.allclose(out, ref32, atol=5e-2, rtol=5e-2), (
        float(jnp.max(jnp.abs(out - ref32))))

    # Also exercise a multi-tile launch (balanced tiles + >= 2 grid steps).
    B2 = 300
    x2 = jax.random.normal(jax.random.PRNGKey(1), (B2, IN_FEATURES),
                           dtype=jnp.float32)
    out2 = jax.block_until_ready(pinn_forward(x2, params))
    ref2 = reference_forward(x2, params)
    assert out2.shape == (B2, OUT_FEATURES), out2.shape
    assert jnp.allclose(out2, ref2, atol=1e-3, rtol=1e-3), (
        float(jnp.max(jnp.abs(out2 - ref2))))

    print("KERNEL_OK")
</pallas_src>

<mosaic_0001>
module attributes {stable_mosaic.version = 11 : i64} {
  func.func @pinn_kernel(%arg0: i32, %arg1: memref<16x22xf32, #tpu.memory_space<vmem>>, %arg2: memref<22x128xf32, #tpu.memory_space<vmem>>, %arg3: memref<1x128xf32, #tpu.memory_space<vmem>>, %arg4: memref<10x128x128xbf16, #tpu.memory_space<vmem>>, %arg5: memref<10x1x128xf32, #tpu.memory_space<vmem>>, %arg6: memref<128x128xbf16, #tpu.memory_space<vmem>>, %arg7: memref<1x128xf32, #tpu.memory_space<vmem>>, %arg8: memref<16x128xf32, #tpu.memory_space<vmem>>) attributes {dimension_semantics = [#tpu.dimension_semantics<parallel>], iteration_bounds = array<i64: 1>, scalar_prefetch = 0 : i64, scratch_operands = 0 : i64, tpu.core_type = #tpu.core_type<tc>, window_params = [{transform_indices = @transform_0, window_bounds = array<i64: 16, 22>}, {pipeline_mode = #tpu.pipeline_mode<synchronous>, transform_indices = @transform_1, window_bounds = array<i64: 22, 128>}, {pipeline_mode = #tpu.pipeline_mode<synchronous>, transform_indices = @transform_2, window_bounds = array<i64: 1, 128>}, {pipeline_mode = #tpu.pipeline_mode<synchronous>, transform_indices = @transform_3, window_bounds = array<i64: 10, 128, 128>}, {pipeline_mode = #tpu.pipeline_mode<synchronous>, transform_indices = @transform_4, window_bounds = array<i64: 10, 1, 128>}, {pipeline_mode = #tpu.pipeline_mode<synchronous>, transform_indices = @transform_5, window_bounds = array<i64: 128, 128>}, {pipeline_mode = #tpu.pipeline_mode<synchronous>, transform_indices = @transform_6, window_bounds = array<i64: 1, 128>}, {transform_indices = @transform_7, window_bounds = array<i64: 16, 128>}]} {
    %c0 = arith.constant 0 : index
    %c0_0 = arith.constant 0 : index
    %0 = vector.load %arg2[%c0, %c0_0] : memref<22x128xf32, #tpu.memory_space<vmem>>, vector<22x128xf32>
    %c0_1 = arith.constant 0 : index
    %c0_2 = arith.constant 0 : index
    %1 = vector.load %arg3[%c0_1, %c0_2] : memref<1x128xf32, #tpu.memory_space<vmem>>, vector<1x128xf32>
    %c0_3 = arith.constant 0 : index
    %c0_4 = arith.constant 0 : index
    %2 = vector.load %arg1[%c0_3, %c0_4] : memref<16x22xf32, #tpu.memory_space<vmem>>, vector<8x22xf32>
    %c8 = arith.constant 8 : index
    %c0_5 = arith.constant 0 : index
    %3 = vector.load %arg1[%c8, %c0_5] : memref<16x22xf32, #tpu.memory_space<vmem>>, vector<8x22xf32>
    %cst = arith.constant dense<0.000000e+00> : vector<8x128xf32>
    %4 = tpu.matmul %2, %0, %cst {dimension_numbers = #tpu.dot_dimension_numbers<[1], [0], [0], [1], [0, 0, 1, 1], [], []>} : vector<8x22xf32>, vector<22x128xf32>, vector<8x128xf32> -> vector<8x128xf32>
    %5 = vector.broadcast %1 : vector<1x128xf32> to vector<8x128xf32>
    %6 = arith.addf %4, %5 : vector<8x128xf32>
    %cst_6 = arith.constant 0.000000e+00 : f32
    %7 = vector.broadcast %cst_6 : f32 to vector<8x128xf32>
    %8 = arith.maximumf %6, %7 : vector<8x128xf32>
    %cst_7 = arith.constant dense<0.000000e+00> : vector<8x128xf32>
    %9 = tpu.matmul %3, %0, %cst_7 {dimension_numbers = #tpu.dot_dimension_numbers<[1], [0], [0], [1], [0, 0, 1, 1], [], []>} : vector<8x22xf32>, vector<22x128xf32>, vector<8x128xf32> -> vector<8x128xf32>
    %10 = vector.broadcast %1 : vector<1x128xf32> to vector<8x128xf32>
    %11 = arith.addf %9, %10 : vector<8x128xf32>
    %cst_8 = arith.constant 0.000000e+00 : f32
    %12 = vector.broadcast %cst_8 : f32 to vector<8x128xf32>
    %13 = arith.maximumf %11, %12 : vector<8x128xf32>
    %c0_9 = arith.constant 0 : index
    %c0_10 = arith.constant 0 : index
    %c0_11 = arith.constant 0 : index
    %14 = vector.load %arg4[%c0_9, %c0_10, %c0_11] : memref<10x128x128xbf16, #tpu.memory_space<vmem>>, vector<1x128x128xbf16>
    %15 = vector.shape_cast %14 : vector<1x128x128xbf16> to vector<128x128xbf16>
    %c0_12 = arith.constant 0 : index
    %c0_13 = arith.constant 0 : index
    %c0_14 = arith.constant 0 : index
    %16 = vector.load %arg5[%c0_12, %c0_13, %c0_14] : memref<10x1x128xf32, #tpu.memory_space<vmem>>, vector<1x1x128xf32>
    %17 = vector.shape_cast %16 : vector<1x1x128xf32> to vector<1x128xf32>
    %18 = arith.truncf %8 : vector<8x128xf32> to vector<8x128xbf16>
    %cst_15 = arith.constant dense<0.000000e+00> : vector<8x128xf32>
    %19 = tpu.matmul %18, %15, %cst_15 {dimension_numbers = #tpu.dot_dimension_numbers<[1], [0], [0], [1], [0, 0, 1, 1], [], []>} : vector<8x128xbf16>, vector<128x128xbf16>, vector<8x128xf32> -> vector<8x128xf32>
    %20 = vector.broadcast %17 : vector<1x128xf32> to vector<8x128xf32>
    %21 = arith.addf %19, %20 : vector<8x128xf32>
    %cst_16 = arith.constant 0.000000e+00 : f32
    %22 = vector.broadcast %cst_16 : f32 to vector<8x128xf32>
    %23 = arith.maximumf %21, %22 : vector<8x128xf32>
    %24 = arith.truncf %13 : vector<8x128xf32> to vector<8x128xbf16>
    %cst_17 = arith.constant dense<0.000000e+00> : vector<8x128xf32>
    %25 = tpu.matmul %24, %15, %cst_17 {dimension_numbers = #tpu.dot_dimension_numbers<[1], [0], [0], [1], [0, 0, 1, 1], [], []>} : vector<8x128xbf16>, vector<128x128xbf16>, vector<8x128xf32> -> vector<8x128xf32>
    %26 = vector.broadcast %17 : vector<1x128xf32> to vector<8x128xf32>
    %27 = arith.addf %25, %26 : vector<8x128xf32>
    %cst_18 = arith.constant 0.000000e+00 : f32
    %28 = vector.broadcast %cst_18 : f32 to vector<8x128xf32>
    %29 = arith.maximumf %27, %28 : vector<8x128xf32>
    %c1 = arith.constant 1 : index
    %c0_19 = arith.constant 0 : index
    %c0_20 = arith.constant 0 : index
    %30 = vector.load %arg4[%c1, %c0_19, %c0_20] : memref<10x128x128xbf16, #tpu.memory_space<vmem>>, vector<1x128x128xbf16>
    %31 = vector.shape_cast %30 : vector<1x128x128xbf16> to vector<128x128xbf16>
    %c1_21 = arith.constant 1 : index
    %c0_22 = arith.constant 0 : index
    %c0_23 = arith.constant 0 : index
    %32 = vector.load %arg5[%c1_21, %c0_22, %c0_23] : memref<10x1x128xf32, #tpu.memory_space<vmem>>, vector<1x1x128xf32>
    %33 = vector.shape_cast %32 : vector<1x1x128xf32> to vector<1x128xf32>
    %34 = arith.truncf %23 : vector<8x128xf32> to vector<8x128xbf16>
    %cst_24 = arith.constant dense<0.000000e+00> : vector<8x128xf32>
    %35 = tpu.matmul %34, %31, %cst_24 {dimension_numbers = #tpu.dot_dimension_numbers<[1], [0], [0], [1], [0, 0, 1, 1], [], []>} : vector<8x128xbf16>, vector<128x128xbf16>, vector<8x128xf32> -> vector<8x128xf32>
    %36 = vector.broadcast %33 : vector<1x128xf32> to vector<8x128xf32>
    %37 = arith.addf %35, %36 : vector<8x128xf32>
    %cst_25 = arith.constant 0.000000e+00 : f32
    %38 = vector.broadcast %cst_25 : f32 to vector<8x128xf32>
    %39 = arith.maximumf %37, %38 : vector<8x128xf32>
    %40 = arith.truncf %29 : vector<8x128xf32> to vector<8x128xbf16>
    %cst_26 = arith.constant dense<0.000000e+00> : vector<8x128xf32>
    %41 = tpu.matmul %40, %31, %cst_26 {dimension_numbers = #tpu.dot_dimension_numbers<[1], [0], [0], [1], [0, 0, 1, 1], [], []>} : vector<8x128xbf16>, vector<128x128xbf16>, vector<8x128xf32> -> vector<8x128xf32>
    %42 = vector.broadcast %33 : vector<1x128xf32> to vector<8x128xf32>
    %43 = arith.addf %41, %42 : vector<8x128xf32>
    %cst_27 = arith.constant 0.000000e+00 : f32
    %44 = vector.broadcast %cst_27 : f32 to vector<8x128xf32>
    %45 = arith.maximumf %43, %44 : vector<8x128xf32>
    %c2 = arith.constant 2 : index
    %c0_28 = arith.constant 0 : index
    %c0_29 = arith.constant 0 : index
    %46 = vector.load %arg4[%c2, %c0_28, %c0_29] : memref<10x128x128xbf16, #tpu.memory_space<vmem>>, vector<1x128x128xbf16>
    %47 = vector.shape_cast %46 : vector<1x128x128xbf16> to vector<128x128xbf16>
    %c2_30 = arith.constant 2 : index
    %c0_31 = arith.constant 0 : index
    %c0_32 = arith.constant 0 : index
    %48 = vector.load %arg5[%c2_30, %c0_31, %c0_32] : memref<10x1x128xf32, #tpu.memory_space<vmem>>, vector<1x1x128xf32>
    %49 = vector.shape_cast %48 : vector<1x1x128xf32> to vector<1x128xf32>
    %50 = arith.truncf %39 : vector<8x128xf32> to vector<8x128xbf16>
    %cst_33 = arith.constant dense<0.000000e+00> : vector<8x128xf32>
    %51 = tpu.matmul %50, %47, %cst_33 {dimension_numbers = #tpu.dot_dimension_numbers<[1], [0], [0], [1], [0, 0, 1, 1], [], []>} : vector<8x128xbf16>, vector<128x128xbf16>, vector<8x128xf32> -> vector<8x128xf32>
    %52 = vector.broadcast %49 : vector<1x128xf32> to vector<8x128xf32>
    %53 = arith.addf %51, %52 : vector<8x128xf32>
    %cst_34 = arith.constant 0.000000e+00 : f32
    %54 = vector.broadcast %cst_34 : f32 to vector<8x128xf32>
    %55 = arith.maximumf %53, %54 : vector<8x128xf32>
    %56 = arith.truncf %45 : vector<8x128xf32> to vector<8x128xbf16>
    %cst_35 = arith.constant dense<0.000000e+00> : vector<8x128xf32>
    %57 = tpu.matmul %56, %47, %cst_35 {dimension_numbers = #tpu.dot_dimension_numbers<[1], [0], [0], [1], [0, 0, 1, 1], [], []>} : vector<8x128xbf16>, vector<128x128xbf16>, vector<8x128xf32> -> vector<8x128xf32>
    %58 = vector.broadcast %49 : vector<1x128xf32> to vector<8x128xf32>
    %59 = arith.addf %57, %58 : vector<8x128xf32>
    %cst_36 = arith.constant 0.000000e+00 : f32
    %60 = vector.broadcast %cst_36 : f32 to vector<8x128xf32>
    %61 = arith.maximumf %59, %60 : vector<8x128xf32>
    %c3 = arith.constant 3 : index
    %c0_37 = arith.constant 0 : index
    %c0_38 = arith.constant 0 : index
    %62 = vector.load %arg4[%c3, %c0_37, %c0_38] : memref<10x128x128xbf16, #tpu.memory_space<vmem>>, vector<1x128x128xbf16>
    %63 = vector.shape_cast %62 : vector<1x128x128xbf16> to vector<128x128xbf16>
    %c3_39 = arith.constant 3 : index
    %c0_40 = arith.constant 0 : index
    %c0_41 = arith.constant 0 : index
    %64 = vector.load %arg5[%c3_39, %c0_40, %c0_41] : memref<10x1x128xf32, #tpu.memory_space<vmem>>, vector<1x1x128xf32>
    %65 = vector.shape_cast %64 : vector<1x1x128xf32> to vector<1x128xf32>
    %66 = arith.truncf %55 : vector<8x128xf32> to vector<8x128xbf16>
    %cst_42 = arith.constant dense<0.000000e+00> : vector<8x128xf32>
    %67 = tpu.matmul %66, %63, %cst_42 {dimension_numbers = #tpu.dot_dimension_numbers<[1], [0], [0], [1], [0, 0, 1, 1], [], []>} : vector<8x128xbf16>, vector<128x128xbf16>, vector<8x128xf32> -> vector<8x128xf32>
    %68 = vector.broadcast %65 : vector<1x128xf32> to vector<8x128xf32>
    %69 = arith.addf %67, %68 : vector<8x128xf32>
    %cst_43 = arith.constant 0.000000e+00 : f32
    %70 = vector.broadcast %cst_43 : f32 to vector<8x128xf32>
    %71 = arith.maximumf %69, %70 : vector<8x128xf32>
    %72 = arith.truncf %61 : vector<8x128xf32> to vector<8x128xbf16>
    %cst_44 = arith.constant dense<0.000000e+00> : vector<8x128xf32>
    %73 = tpu.matmul %72, %63, %cst_44 {dimension_numbers = #tpu.dot_dimension_numbers<[1], [0], [0], [1], [0, 0, 1, 1], [], []>} : vector<8x128xbf16>, vector<128x128xbf16>, vector<8x128xf32> -> vector<8x128xf32>
    %74 = vector.broadcast %65 : vector<1x128xf32> to vector<8x128xf32>
    %75 = arith.addf %73, %74 : vector<8x128xf32>
    %cst_45 = arith.constant 0.000000e+00 : f32
    %76 = vector.broadcast %cst_45 : f32 to vector<8x128xf32>
    %77 = arith.maximumf %75, %76 : vector<8x128xf32>
    %c4 = arith.constant 4 : index
    %c0_46 = arith.constant 0 : index
    %c0_47 = arith.constant 0 : index
    %78 = vector.load %arg4[%c4, %c0_46, %c0_47] : memref<10x128x128xbf16, #tpu.memory_space<vmem>>, vector<1x128x128xbf16>
    %79 = vector.shape_cast %78 : vector<1x128x128xbf16> to vector<128x128xbf16>
    %c4_48 = arith.constant 4 : index
    %c0_49 = arith.constant 0 : index
    %c0_50 = arith.constant 0 : index
    %80 = vector.load %arg5[%c4_48, %c0_49, %c0_50] : memref<10x1x128xf32, #tpu.memory_space<vmem>>, vector<1x1x128xf32>
    %81 = vector.shape_cast %80 : vector<1x1x128xf32> to vector<1x128xf32>
    %82 = arith.truncf %71 : vector<8x128xf32> to vector<8x128xbf16>
    %cst_51 = arith.constant dense<0.000000e+00> : vector<8x128xf32>
    %83 = tpu.matmul %82, %79, %cst_51 {dimension_numbers = #tpu.dot_dimension_numbers<[1], [0], [0], [1], [0, 0, 1, 1], [], []>} : vector<8x128xbf16>, vector<128x128xbf16>, vector<8x128xf32> -> vector<8x128xf32>
    %84 = vector.broadcast %81 : vector<1x128xf32> to vector<8x128xf32>
    %85 = arith.addf %83, %84 : vector<8x128xf32>
    %cst_52 = arith.constant 0.000000e+00 : f32
    %86 = vector.broadcast %cst_52 : f32 to vector<8x128xf32>
    %87 = arith.maximumf %85, %86 : vector<8x128xf32>
    %88 = arith.truncf %77 : vector<8x128xf32> to vector<8x128xbf16>
    %cst_53 = arith.constant dense<0.000000e+00> : vector<8x128xf32>
    %89 = tpu.matmul %88, %79, %cst_53 {dimension_numbers = #tpu.dot_dimension_numbers<[1], [0], [0], [1], [0, 0, 1, 1], [], []>} : vector<8x128xbf16>, vector<128x128xbf16>, vector<8x128xf32> -> vector<8x128xf32>
    %90 = vector.broadcast %81 : vector<1x128xf32> to vector<8x128xf32>
    %91 = arith.addf %89, %90 : vector<8x128xf32>
    %cst_54 = arith.constant 0.000000e+00 : f32
    %92 = vector.broadcast %cst_54 : f32 to vector<8x128xf32>
    %93 = arith.maximumf %91, %92 : vector<8x128xf32>
    %c5 = arith.constant 5 : index
    %c0_55 = arith.constant 0 : index
    %c0_56 = arith.constant 0 : index
    %94 = vector.load %arg4[%c5, %c0_55, %c0_56] : memref<10x128x128xbf16, #tpu.memory_space<vmem>>, vector<1x128x128xbf16>
    %95 = vector.shape_cast %94 : vector<1x128x128xbf16> to vector<128x128xbf16>
    %c5_57 = arith.constant 5 : index
    %c0_58 = arith.constant 0 : index
    %c0_59 = arith.constant 0 : index
    %96 = vector.load %arg5[%c5_57, %c0_58, %c0_59] : memref<10x1x128xf32, #tpu.memory_space<vmem>>, vector<1x1x128xf32>
    %97 = vector.shape_cast %96 : vector<1x1x128xf32> to vector<1x128xf32>
    %98 = arith.truncf %87 : vector<8x128xf32> to vector<8x128xbf16>
    %cst_60 = arith.constant dense<0.000000e+00> : vector<8x128xf32>
    %99 = tpu.matmul %98, %95, %cst_60 {dimension_numbers = #tpu.dot_dimension_numbers<[1], [0], [0], [1], [0, 0, 1, 1], [], []>} : vector<8x128xbf16>, vector<128x128xbf16>, vector<8x128xf32> -> vector<8x128xf32>
    %100 = vector.broadcast %97 : vector<1x128xf32> to vector<8x128xf32>
    %101 = arith.addf %99, %100 : vector<8x128xf32>
    %cst_61 = arith.constant 0.000000e+00 : f32
    %102 = vector.broadcast %cst_61 : f32 to vector<8x128xf32>
    %103 = arith.maximumf %101, %102 : vector<8x128xf32>
    %104 = arith.truncf %93 : vector<8x128xf32> to vector<8x128xbf16>
    %cst_62 = arith.constant dense<0.000000e+00> : vector<8x128xf32>
    %105 = tpu.matmul %104, %95, %cst_62 {dimension_numbers = #tpu.dot_dimension_numbers<[1], [0], [0], [1], [0, 0, 1, 1], [], []>} : vector<8x128xbf16>, vector<128x128xbf16>, vector<8x128xf32> -> vector<8x128xf32>
    %106 = vector.broadcast %97 : vector<1x128xf32> to vector<8x128xf32>
    %107 = arith.addf %105, %106 : vector<8x128xf32>
    %cst_63 = arith.constant 0.000000e+00 : f32
    %108 = vector.broadcast %cst_63 : f32 to vector<8x128xf32>
    %109 = arith.maximumf %107, %108 : vector<8x128xf32>
    %c6 = arith.constant 6 : index
    %c0_64 = arith.constant 0 : index
    %c0_65 = arith.constant 0 : index
    %110 = vector.load %arg4[%c6, %c0_64, %c0_65] : memref<10x128x128xbf16, #tpu.memory_space<vmem>>, vector<1x128x128xbf16>
    %111 = vector.shape_cast %110 : vector<1x128x128xbf16> to vector<128x128xbf16>
    %c6_66 = arith.constant 6 : index
    %c0_67 = arith.constant 0 : index
    %c0_68 = arith.constant 0 : index
    %112 = vector.load %arg5[%c6_66, %c0_67, %c0_68] : memref<10x1x128xf32, #tpu.memory_space<vmem>>, vector<1x1x128xf32>
    %113 = vector.shape_cast %112 : vector<1x1x128xf32> to vector<1x128xf32>
    %114 = arith.truncf %103 : vector<8x128xf32> to vector<8x128xbf16>
    %cst_69 = arith.constant dense<0.000000e+00> : vector<8x128xf32>
    %115 = tpu.matmul %114, %111, %cst_69 {dimension_numbers = #tpu.dot_dimension_numbers<[1], [0], [0], [1], [0, 0, 1, 1], [], []>} : vector<8x128xbf16>, vector<128x128xbf16>, vector<8x128xf32> -> vector<8x128xf32>
    %116 = vector.broadcast %113 : vector<1x128xf32> to vector<8x128xf32>
    %117 = arith.addf %115, %116 : vector<8x128xf32>
    %cst_70 = arith.constant 0.000000e+00 : f32
    %118 = vector.broadcast %cst_70 : f32 to vector<8x128xf32>
    %119 = arith.maximumf %117, %118 : vector<8x128xf32>
    %120 = arith.truncf %109 : vector<8x128xf32> to vector<8x128xbf16>
    %cst_71 = arith.constant dense<0.000000e+00> : vector<8x128xf32>
    %121 = tpu.matmul %120, %111, %cst_71 {dimension_numbers = #tpu.dot_dimension_numbers<[1], [0], [0], [1], [0, 0, 1, 1], [], []>} : vector<8x128xbf16>, vector<128x128xbf16>, vector<8x128xf32> -> vector<8x128xf32>
    %122 = vector.broadcast %113 : vector<1x128xf32> to vector<8x128xf32>
    %123 = arith.addf %121, %122 : vector<8x128xf32>
    %cst_72 = arith.constant 0.000000e+00 : f32
    %124 = vector.broadcast %cst_72 : f32 to vector<8x128xf32>
    %125 = arith.maximumf %123, %124 : vector<8x128xf32>
    %c7 = arith.constant 7 : index
    %c0_73 = arith.constant 0 : index
    %c0_74 = arith.constant 0 : index
    %126 = vector.load %arg4[%c7, %c0_73, %c0_74] : memref<10x128x128xbf16, #tpu.memory_space<vmem>>, vector<1x128x128xbf16>
    %127 = vector.shape_cast %126 : vector<1x128x128xbf16> to vector<128x128xbf16>
    %c7_75 = arith.constant 7 : index
    %c0_76 = arith.constant 0 : index
    %c0_77 = arith.constant 0 : index
    %128 = vector.load %arg5[%c7_75, %c0_76, %c0_77] : memref<10x1x128xf32, #tpu.memory_space<vmem>>, vector<1x1x128xf32>
    %129 = vector.shape_cast %128 : vector<1x1x128xf32> to vector<1x128xf32>
    %130 = arith.truncf %119 : vector<8x128xf32> to vector<8x128xbf16>
    %cst_78 = arith.constant dense<0.000000e+00> : vector<8x128xf32>
    %131 = tpu.matmul %130, %127, %cst_78 {dimension_numbers = #tpu.dot_dimension_numbers<[1], [0], [0], [1], [0, 0, 1, 1], [], []>} : vector<8x128xbf16>, vector<128x128xbf16>, vector<8x128xf32> -> vector<8x128xf32>
    %132 = vector.broadcast %129 : vector<1x128xf32> to vector<8x128xf32>
    %133 = arith.addf %131, %132 : vector<8x128xf32>
    %cst_79 = arith.constant 0.000000e+00 : f32
    %134 = vector.broadcast %cst_79 : f32 to vector<8x128xf32>
    %135 = arith.maximumf %133, %134 : vector<8x128xf32>
    %136 = arith.truncf %125 : vector<8x128xf32> to vector<8x128xbf16>
    %cst_80 = arith.constant dense<0.000000e+00> : vector<8x128xf32>
    %137 = tpu.matmul %136, %127, %cst_80 {dimension_numbers = #tpu.dot_dimension_numbers<[1], [0], [0], [1], [0, 0, 1, 1], [], []>} : vector<8x128xbf16>, vector<128x128xbf16>, vector<8x128xf32> -> vector<8x128xf32>
    %138 = vector.broadcast %129 : vector<1x128xf32> to vector<8x128xf32>
    %139 = arith.addf %137, %138 : vector<8x128xf32>
    %cst_81 = arith.constant 0.000000e+00 : f32
    %140 = vector.broadcast %cst_81 : f32 to vector<8x128xf32>
    %141 = arith.maximumf %139, %140 : vector<8x128xf32>
    %c8_82 = arith.constant 8 : index
    %c0_83 = arith.constant 0 : index
    %c0_84 = arith.constant 0 : index
    %142 = vector.load %arg4[%c8_82, %c0_83, %c0_84] : memref<10x128x128xbf16, #tpu.memory_space<vmem>>, vector<1x128x128xbf16>
    %143 = vector.shape_cast %142 : vector<1x128x128xbf16> to vector<128x128xbf16>
    %c8_85 = arith.constant 8 : index
    %c0_86 = arith.constant 0 : index
    %c0_87 = arith.constant 0 : index
    %144 = vector.load %arg5[%c8_85, %c0_86, %c0_87] : memref<10x1x128xf32, #tpu.memory_space<vmem>>, vector<1x1x128xf32>
    %145 = vector.shape_cast %144 : vector<1x1x128xf32> to vector<1x128xf32>
    %146 = arith.truncf %135 : vector<8x128xf32> to vector<8x128xbf16>
    %cst_88 = arith.constant dense<0.000000e+00> : vector<8x128xf32>
    %147 = tpu.matmul %146, %143, %cst_88 {dimension_numbers = #tpu.dot_dimension_numbers<[1], [0], [0], [1], [0, 0, 1, 1], [], []>} : vector<8x128xbf16>, vector<128x128xbf16>, vector<8x128xf32> -> vector<8x128xf32>
    %148 = vector.broadcast %145 : vector<1x128xf32> to vector<8x128xf32>
    %149 = arith.addf %147, %148 : vector<8x128xf32>
    %cst_89 = arith.constant 0.000000e+00 : f32
    %150 = vector.broadcast %cst_89 : f32 to vector<8x128xf32>
    %151 = arith.maximumf %149, %150 : vector<8x128xf32>
    %152 = arith.truncf %141 : vector<8x128xf32> to vector<8x128xbf16>
    %cst_90 = arith.constant dense<0.000000e+00> : vector<8x128xf32>
    %153 = tpu.matmul %152, %143, %cst_90 {dimension_numbers = #tpu.dot_dimension_numbers<[1], [0], [0], [1], [0, 0, 1, 1], [], []>} : vector<8x128xbf16>, vector<128x128xbf16>, vector<8x128xf32> -> vector<8x128xf32>
    %154 = vector.broadcast %145 : vector<1x128xf32> to vector<8x128xf32>
    %155 = arith.addf %153, %154 : vector<8x128xf32>
    %cst_91 = arith.constant 0.000000e+00 : f32
    %156 = vector.broadcast %cst_91 : f32 to vector<8x128xf32>
    %157 = arith.maximumf %155, %156 : vector<8x128xf32>
    %c9 = arith.constant 9 : index
    %c0_92 = arith.constant 0 : index
    %c0_93 = arith.constant 0 : index
    %158 = vector.load %arg4[%c9, %c0_92, %c0_93] : memref<10x128x128xbf16, #tpu.memory_space<vmem>>, vector<1x128x128xbf16>
    %159 = vector.shape_cast %158 : vector<1x128x128xbf16> to vector<128x128xbf16>
    %c9_94 = arith.constant 9 : index
    %c0_95 = arith.constant 0 : index
    %c0_96 = arith.constant 0 : index
    %160 = vector.load %arg5[%c9_94, %c0_95, %c0_96] : memref<10x1x128xf32, #tpu.memory_space<vmem>>, vector<1x1x128xf32>
    %161 = vector.shape_cast %160 : vector<1x1x128xf32> to vector<1x128xf32>
    %162 = arith.truncf %151 : vector<8x128xf32> to vector<8x128xbf16>
    %cst_97 = arith.constant dense<0.000000e+00> : vector<8x128xf32>
    %163 = tpu.matmul %162, %159, %cst_97 {dimension_numbers = #tpu.dot_dimension_numbers<[1], [0], [0], [1], [0, 0, 1, 1], [], []>} : vector<8x128xbf16>, vector<128x128xbf16>, vector<8x128xf32> -> vector<8x128xf32>
    %164 = vector.broadcast %161 : vector<1x128xf32> to vector<8x128xf32>
    %165 = arith.addf %163, %164 : vector<8x128xf32>
    %cst_98 = arith.constant 0.000000e+00 : f32
    %166 = vector.broadcast %cst_98 : f32 to vector<8x128xf32>
    %167 = arith.maximumf %165, %166 : vector<8x128xf32>
    %168 = arith.truncf %157 : vector<8x128xf32> to vector<8x128xbf16>
    %cst_99 = arith.constant dense<0.000000e+00> : vector<8x128xf32>
    %169 = tpu.matmul %168, %159, %cst_99 {dimension_numbers = #tpu.dot_dimension_numbers<[1], [0], [0], [1], [0, 0, 1, 1], [], []>} : vector<8x128xbf16>, vector<128x128xbf16>, vector<8x128xf32> -> vector<8x128xf32>
    %170 = vector.broadcast %161 : vector<1x128xf32> to vector<8x128xf32>
    %171 = arith.addf %169, %170 : vector<8x128xf32>
    %cst_100 = arith.constant 0.000000e+00 : f32
    %172 = vector.broadcast %cst_100 : f32 to vector<8x128xf32>
    %173 = arith.maximumf %171, %172 : vector<8x128xf32>
    %c0_101 = arith.constant 0 : index
    %c0_102 = arith.constant 0 : index
    %174 = vector.load %arg6[%c0_101, %c0_102] : memref<128x128xbf16, #tpu.memory_space<vmem>>, vector<128x128xbf16>
    %c0_103 = arith.constant 0 : index
    %c0_104 = arith.constant 0 : index
    %175 = vector.load %arg7[%c0_103, %c0_104] : memref<1x128xf32, #tpu.memory_space<vmem>>, vector<1x128xf32>
    %176 = arith.truncf %167 : vector<8x128xf32> to vector<8x128xbf16>
    %cst_105 = arith.constant dense<0.000000e+00> : vector<8x128xf32>
    %177 = tpu.matmul %176, %174, %cst_105 {dimension_numbers = #tpu.dot_dimension_numbers<[1], [0], [0], [1], [0, 0, 1, 1], [], []>} : vector<8x128xbf16>, vector<128x128xbf16>, vector<8x128xf32> -> vector<8x128xf32>
    %178 = vector.broadcast %175 : vector<1x128xf32> to vector<8x128xf32>
    %179 = arith.addf %177, %178 : vector<8x128xf32>
    %180 = arith.truncf %173 : vector<8x128xf32> to vector<8x128xbf16>
    %cst_106 = arith.constant dense<0.000000e+00> : vector<8x128xf32>
    %181 = tpu.matmul %180, %174, %cst_106 {dimension_numbers = #tpu.dot_dimension_numbers<[1], [0], [0], [1], [0, 0, 1, 1], [], []>} : vector<8x128xbf16>, vector<128x128xbf16>, vector<8x128xf32> -> vector<8x128xf32>
    %182 = vector.broadcast %175 : vector<1x128xf32> to vector<8x128xf32>
    %183 = arith.addf %181, %182 : vector<8x128xf32>
    %c0_107 = arith.constant 0 : index
    %c0_108 = arith.constant 0 : index
    %184 = vector.load %arg8[%c0_107, %c0_108] : memref<16x128xf32, #tpu.memory_space<vmem>>, vector<8x128xf32>
    tpu.vector_store %arg8[%c0_107, %c0_108], %179 {strides = array<i32>} : memref<16x128xf32, #tpu.memory_space<vmem>>, vector<8x128xf32>,
    %c8_109 = arith.constant 8 : index
    %c0_110 = arith.constant 0 : index
    %185 = vector.load %arg8[%c8_109, %c0_110] : memref<16x128xf32, #tpu.memory_space<vmem>>, vector<8x128xf32>
    tpu.vector_store %arg8[%c8_109, %c0_110], %183 {strides = array<i32>} : memref<16x128xf32, #tpu.memory_space<vmem>>, vector<8x128xf32>,
    return
  }
  func.func @transform_0(%arg0: i32) -> (i32, i32) {
    %c0_i32 = arith.constant 0 : i32
    %c0_i32_0 = arith.constant 0 : i32
    return %arg0, %c0_i32 : i32, i32
  }
  func.func @transform_1(%arg0: i32) -> (i32, i32) {
    %c0_i32 = arith.constant 0 : i32
    %c0_i32_0 = arith.constant 0 : i32
    %c0_i32_1 = arith.constant 0 : i32
    return %c0_i32, %c0_i32_0 : i32, i32
  }
  func.func @transform_2(%arg0: i32) -> (i32, i32) {
    %c0_i32 = arith.constant 0 : i32
    %c0_i32_0 = arith.constant 0 : i32
    %c0_i32_1 = arith.constant 0 : i32
    return %c0_i32, %c0_i32_0 : i32, i32
  }
  func.func @transform_3(%arg0: i32) -> (i32, i32, i32) {
    %c0_i32 = arith.constant 0 : i32
    %c0_i32_0 = arith.constant 0 : i32
    %c0_i32_1 = arith.constant 0 : i32
    %c0_i32_2 = arith.constant 0 : i32
    return %c0_i32, %c0_i32_0, %c0_i32_1 : i32, i32, i32
  }
  func.func @transform_4(%arg0: i32) -> (i32, i32, i32) {
    %c0_i32 = arith.constant 0 : i32
    %c0_i32_0 = arith.constant 0 : i32
    %c0_i32_1 = arith.constant 0 : i32
    %c0_i32_2 = arith.constant 0 : i32
    return %c0_i32, %c0_i32_0, %c0_i32_1 : i32, i32, i32
  }
  func.func @transform_5(%arg0: i32) -> (i32, i32) {
    %c0_i32 = arith.constant 0 : i32
    %c0_i32_0 = arith.constant 0 : i32
    %c0_i32_1 = arith.constant 0 : i32
    return %c0_i32, %c0_i32_0 : i32, i32
  }
  func.func @transform_6(%arg0: i32) -> (i32, i32) {
    %c0_i32 = arith.constant 0 : i32
    %c0_i32_0 = arith.constant 0 : i32
    %c0_i32_1 = arith.constant 0 : i32
    return %c0_i32, %c0_i32_0 : i32, i32
  }
  func.func @transform_7(%arg0: i32) -> (i32, i32) {
    %c0_i32 = arith.constant 0 : i32
    %c0_i32_0 = arith.constant 0 : i32
    return %arg0, %c0_i32 : i32, i32
  }
}

</mosaic_0001>

<llo_original>
// kernel: pinn_forward.1
$region0: #{pinn_forward.1}
  #allocation0 [shape = 'u32[]', space=smem, size = 0x4, offset = 0x4, fixed_abs, tag = 'smem constant byte address 0x4 - core index']
  #allocation1 [shape = 'u32[144,128]{1,0:T(1,128)}', space=vmem, size = 0x12000, scoped, tag = 'internal scratch']
  %s0 = inlined_call_operand.vmem [shape: f32[16,22], index: 0, kind: input, shape index: {}]
  %s1 = inlined_call_operand.vmem [shape: f32[22,128], index: 1, kind: input, shape index: {}]
  %s2 = inlined_call_operand.vmem [shape: f32[1,128], index: 2, kind: input, shape index: {}]
  %s3 = inlined_call_operand.hbm [shape: bf16[10,128,128], index: 3, kind: input, shape index: {}]
  %s4 = inlined_call_operand.vmem [shape: f32[10,1,128], index: 4, kind: input, shape index: {}]
  %s5 = inlined_call_operand.hbm [shape: bf16[128,128], index: 5, kind: input, shape index: {}]
  %s6 = inlined_call_operand.vmem [shape: f32[1,128], index: 6, kind: input, shape index: {}]
  %s7 = inlined_call_operand.hbm [shape: f32[16,128], index: 7, kind: output, shape index: {}]
  %s8 = sld [smem:[#allocation0]]
  $region46: #{pinn_forward.1} parent=0
    _
  %s10 = ssub.s32 1, %s8
  %s11 = scalar_select 0, %s10, %s8
  $region1: #{pinn_forward.1} parent=0
    #allocation2 [shape = 'u8[327680]{0}', space=vmem, size = 0x50000, scoped, tag = 'input window, operand 3, single buffered']
    #allocation3 [shape = 's32[1]{0}', space=sflag, size = 0x4, scoped, tag = 'scoped memory for pinn_forward.1']
    #allocation4 [shape = 's32[1]{0}', space=sflag, size = 0x4, scoped, tag = 'scoped memory for pinn_forward.1']
    #allocation5 [shape = 'u8[32768]{0}', space=vmem, size = 0x8000, scoped, tag = 'input window, operand 5, single buffered']
    #allocation6 [shape = 's32[1]{0}', space=sflag, size = 0x4, scoped, tag = 'scoped memory for pinn_forward.1']
    #allocation7 [shape = 'u8[8192]{0}', space=vmem, size = 0x2000, scoped, tag = 'output window, operand 0, single buffered']
    %12 = vsyncpa [#allocation3], 0
    %13 = vsyncpa [#allocation6], 0
    %14 = vsyncpa [#allocation4], 0
    // Predicated region
    $region2: #{pinn_forward.1} parent=1 // pred_check
      _
    $region3: #{pinn_forward.1} parent=1 // pred_check_branch
      %16 = sbr.rel (0) target = $region5
    $region4: #{pinn_forward.1} parent=1 // pred_region
      _
    $region5: #{pinn_forward.1} parent=1 // pred_fallthru
      _
    // Predicated region
    $region6: #{pinn_forward.1} parent=1 // pred_check
      _
    $region7: #{pinn_forward.1} parent=1 // pred_check_branch
      %18 = sbr.rel (0) target = $region9
    $region8: #{pinn_forward.1} parent=1 // pred_region
      _
    $region9: #{pinn_forward.1} parent=1 // pred_fallthru
      _
    // Predicated region
    $region10: #{pinn_forward.1} parent=1 // pred_check
      _
    $region11: #{pinn_forward.1} parent=1 // pred_check_branch
      %20 = sbr.rel (0) target = $region13
    $region12: #{pinn_forward.1} parent=1 // pred_region
      _
    $region13: #{pinn_forward.1} parent=1 // pred_fallthru
      _
    // Predicated region
    $region14: #{pinn_forward.1} parent=1 // pred_check
      _
    $region15: #{pinn_forward.1} parent=1 // pred_check_branch
      %22 = sbr.rel (0) target = $region17
    $region16: #{pinn_forward.1} parent=1 // pred_region
      %s24 = ssub.s32 10240, 10240
      %25 = vsyncadd [#allocation3], %s24
      %s26 = sshll.u32 [#allocation2], 4
      %s27 = int_to_ptr.vmem [resolvable:$true] %s26
      %32 = dma.hbm_to_vmem [thread:$0]  %s3, 10240, %s27, [#allocation3], 64, 64, 4
    $region17: #{pinn_forward.1} parent=1 // pred_fallthru
      _
    // Predicated region
    $region18: #{pinn_forward.1} parent=1 // pred_check
      _
    $region19: #{pinn_forward.1} parent=1 // pred_check_branch
      %34 = sbr.rel (0) target = $region21
    $region20: #{pinn_forward.1} parent=1 // pred_region
      _
    $region21: #{pinn_forward.1} parent=1 // pred_fallthru
      _
    // Predicated region
    $region22: #{pinn_forward.1} parent=1 // pred_check
      _
    $region23: #{pinn_forward.1} parent=1 // pred_check_branch
      %36 = sbr.rel (0) target = $region25
    $region24: #{pinn_forward.1} parent=1 // pred_region
      %s38 = ssub.s32 1024, 1024
      %39 = vsyncadd [#allocation6], %s38
      %s40 = sshll.u32 [#allocation5], 4
      %s41 = int_to_ptr.vmem [resolvable:$true] %s40
      %46 = dma.hbm_to_vmem [thread:$0]  %s5, 1024, %s41, [#allocation6], 64, 64, 4
    $region25: #{pinn_forward.1} parent=1 // pred_fallthru
      _
    // Predicated region
    $region26: #{pinn_forward.1} parent=1 // pred_check
      _
    $region27: #{pinn_forward.1} parent=1 // pred_check_branch
      %48 = sbr.rel (0) target = $region29
    $region28: #{pinn_forward.1} parent=1 // pred_region
      _
    $region29: #{pinn_forward.1} parent=1 // pred_fallthru
      _
    // Predicated region
    $region30: #{pinn_forward.1} parent=1 // pred_check
      _
    $region31: #{pinn_forward.1} parent=1 // pred_check_branch
      %50 = sbr.rel (0) target = $region33
    $region32: #{pinn_forward.1} parent=1 // pred_region
      %51 = dma.done [#allocation3], 10240
    $region33: #{pinn_forward.1} parent=1 // pred_fallthru
      _
    // Predicated region
    $region34: #{pinn_forward.1} parent=1 // pred_check
      _
    $region35: #{pinn_forward.1} parent=1 // pred_check_branch
      %53 = sbr.rel (0) target = $region37
    $region36: #{pinn_forward.1} parent=1 // pred_region
      %54 = dma.done [#allocation6], 1024
    $region37: #{pinn_forward.1} parent=1 // pred_fallthru
      _
    %v56 = vld [vmem:[%s1] sm:$0xff]
    %v57 = vld [vmem:[%s1 + $0x8] sm:$0xff]
    %v58 = vld [vmem:[%s1 + $0x10] sm:$0x3f]
    %v59 = vld [vmem:[%s2] sm:$0x1]
    %v60 = vld [vmem:[%s0] sm:$0xff]
    %v61 = vld [vmem:[%s0 + $0x8] sm:$0xff]
    %v63 = vlaneseq
    %v64 = vshrl.u32 %v63, 7
    %v65 = vsub.s32 0, %v64
    %v66 = vrot.slane %v59, %v65
    %vm68 = vcmask 179200
    %v70 = vsel %vm68, %v60, 0
    %vm72 = vcmask 1045504
    %v74 = vsel %vm72, %v58, 0
    %76 = vmatprep.subr.mxu0 0.0
    %77 = vmatpush1.msra.mxu0 %v56
    %78 = vmatprep.subr.mxu0 0.0
    %79 = vmatpush1.msra.mxu0 %v57
    %80 = vmatprep.subr.mxu0 0.0
    %81 = vmatpush1.msra.mxu0 %v74
    %82 = vmatprep.subr.mxu0 0.0
    %83 = vmatpush1.msra.mxu0 0.0
    %84 = vmatprep.subr.mxu0 0.0
    %85 = vmatpush1.msra.mxu0 0.0
    %86 = vmatprep.subr.mxu0 0.0
    %87 = vmatpush1.msra.mxu0 0.0
    %88 = vmatprep.subr.mxu0 0.0
    %89 = vmatpush1.msra.mxu0 0.0
    %90 = vmatprep.subr.mxu0 0.0
    %91 = vmatpush1.msra.mxu0 0.0
    %92 = vmatprep.subr.mxu0 0.0
    %93 = vmatpush1.msra.mxu0 0.0
    %94 = vmatprep.subr.mxu0 0.0
    %95 = vmatpush1.msra.mxu0 0.0
    %96 = vmatprep.subr.mxu0 0.0
    %97 = vmatpush1.msra.mxu0 0.0
    %98 = vmatprep.subr.mxu0 0.0
    %99 = vmatpush1.msra.mxu0 0.0
    %100 = vmatprep.subr.mxu0 0.0
    %101 = vmatpush1.msra.mxu0 0.0
    %102 = vmatprep.subr.mxu0 0.0
    %103 = vmatpush1.msra.mxu0 0.0
    %104 = vmatprep.subr.mxu0 0.0
    %105 = vmatpush1.msra.mxu0 0.0
    %106 = vmatprep.subr.mxu0 0.0
    %107 = vmatpush1.msra.mxu0 0.0
    %108 = vmatprep.subr.mxu0 0.0
    %109 = vmatpush1.msra.mxu0 0.0
    %110 = vmatprep.subr.mxu0 0.0
    %111 = vmatpush1.msra.mxu0 0.0
    %112 = vmatprep.subr.mxu0 0.0
    %113 = vmatpush1.msra.mxu0 0.0
    %114 = vmatprep.subr.mxu0 0.0
    %115 = vmatpush1.msra.mxu0 0.0
    %116 = vmatprep.subr.mxu0 0.0
    %117 = vmatpush1.msra.mxu0 0.0
    %118 = vmatprep.subr.mxu0 0.0
    %119 = vmatpush1.msra.mxu0 0.0
    %120 = vmatprep.subr.mxu0 0.0
    %121 = vmatpush1.msra.mxu0 0.0
    %122 = vmatprep.subr.mxu0 0.0
    %123 = vmatpush1.msra.mxu0 0.0
    %124 = vmatprep.subr.mxu0 0.0
    %125 = vmatpush1.msra.mxu0 0.0
    %126 = vmatprep.subr.mxu0 0.0
    %127 = vmatpush1.msra.mxu0 0.0
    %128 = vmatprep.subr.mxu0 0.0
    %129 = vmatpush1.msra.mxu0 0.0
    %130 = vmatprep.subr.mxu0 0.0
    %131 = vmatpush1.msra.mxu0 0.0
    %132 = vmatprep.subr.mxu0 0.0
    %133 = vmatpush1.msra.mxu0 0.0
    %134 = vmatprep.subr.mxu0 0.0
    %135 = vmatpush1.msra.mxu0 0.0
    %136 = vmatprep.subr.mxu0 0.0
    %137 = vmatpush1.msra.mxu0 0.0
    %138 = vmatprep.subr.mxu0 0.0
    %139 = vmatpush1.msra.mxu0 0.0
    %140 = vmatprep.mubr.f32.mxu0 0.0
    %141 = vmatmul.mubr.f32.gmra.mrb[0].mxu0 %v70
    %v142 = vpop.f32.mrb[0].mxu0
    %v143 = vadd.f32 %v66, %v142
    %v144 = vpop.f32.mrb[0].mxu0
    %145 = vdwg.mxu0
    %v146 = vmax.f32 %v143, 0.0
    %v148 = vsel %vm68, %v61, 0
    %150 = vmatprep.subr.mxu0 0.0
    %151 = vmatpush1.msra.mxu0 %v56
    %152 = vmatprep.subr.mxu0 0.0
    %153 = vmatpush1.msra.mxu0 %v57
    %154 = vmatprep.subr.mxu0 0.0
    %155 = vmatpush1.msra.mxu0 %v74
    %156 = vmatprep.subr.mxu0 0.0
    %157 = vmatpush1.msra.mxu0 0.0
    %158 = vmatprep.subr.mxu0 0.0
    %159 = vmatpush1.msra.mxu0 0.0
    %160 = vmatprep.subr.mxu0 0.0
    %161 = vmatpush1.msra.mxu0 0.0
    %162 = vmatprep.subr.mxu0 0.0
    %163 = vmatpush1.msra.mxu0 0.0
    %164 = vmatprep.subr.mxu0 0.0
    %165 = vmatpush1.msra.mxu0 0.0
    %166 = vmatprep.subr.mxu0 0.0
    %167 = vmatpush1.msra.mxu0 0.0
    %168 = vmatprep.subr.mxu0 0.0
    %169 = vmatpush1.msra.mxu0 0.0
    %170 = vmatprep.subr.mxu0 0.0
    %171 = vmatpush1.msra.mxu0 0.0
    %172 = vmatprep.subr.mxu0 0.0
    %173 = vmatpush1.msra.mxu0 0.0
    %174 = vmatprep.subr.mxu0 0.0
    %175 = vmatpush1.msra.mxu0 0.0
    %176 = vmatprep.subr.mxu0 0.0
    %177 = vmatpush1.msra.mxu0 0.0
    %178 = vmatprep.subr.mxu0 0.0
    %179 = vmatpush1.msra.mxu0 0.0
    %180 = vmatprep.subr.mxu0 0.0
    %181 = vmatpush1.msra.mxu0 0.0
    %182 = vmatprep.subr.mxu0 0.0
    %183 = vmatpush1.msra.mxu0 0.0
    %184 = vmatprep.subr.mxu0 0.0
    %185 = vmatpush1.msra.mxu0 0.0
    %186 = vmatprep.subr.mxu0 0.0
    %187 = vmatpush1.msra.mxu0 0.0
    %188 = vmatprep.subr.mxu0 0.0
    %189 = vmatpush1.msra.mxu0 0.0
    %190 = vmatprep.subr.mxu0 0.0
    %191 = vmatpush1.msra.mxu0 0.0
    %192 = vmatprep.subr.mxu0 0.0
    %193 = vmatpush1.msra.mxu0 0.0
    %194 = vmatprep.subr.mxu0 0.0
    %195 = vmatpush1.msra.mxu0 0.0
    %196 = vmatprep.subr.mxu0 0.0
    %197 = vmatpush1.msra.mxu0 0.0
    %198 = vmatprep.subr.mxu0 0.0
    %199 = vmatpush1.msra.mxu0 0.0
    %200 = vmatprep.subr.mxu0 0.0
    %201 = vmatpush1.msra.mxu0 0.0
    %202 = vmatprep.subr.mxu0 0.0
    %203 = vmatpush1.msra.mxu0 0.0
    %204 = vmatprep.subr.mxu0 0.0
    %205 = vmatpush1.msra.mxu0 0.0
    %206 = vmatprep.subr.mxu0 0.0
    %207 = vmatpush1.msra.mxu0 0.0
    %208 = vmatprep.subr.mxu0 0.0
    %209 = vmatpush1.msra.mxu0 0.0
    %210 = vmatprep.subr.mxu0 0.0
    %211 = vmatpush1.msra.mxu0 0.0
    %212 = vmatprep.subr.mxu0 0.0
    %213 = vmatpush1.msra.mxu0 0.0
    %214 = vmatprep.mubr.f32.mxu0 0.0
    %215 = vmatmul.mubr.f32.gmra.mrb[0].mxu0 %v148
    %v216 = vpop.f32.mrb[0].mxu0
    %v217 = vadd.f32 %v66, %v216
    %v218 = vpop.f32.mrb[0].mxu0
    %219 = vdwg.mxu0
    %v220 = vmax.f32 %v217, 0.0
    %v221 = vld [vmem:[#allocation2] sm:$0xf]
    %v222 = vld [vmem:[#allocation2 + $0x4] sm:$0xf]
    %v223 = vld [vmem:[#allocation2 + $0x8] sm:$0xf]
    %v224 = vld [vmem:[#allocation2 + $0xc] sm:$0xf]
    %v225 = vld [vmem:[#allocation2 + $0x10] sm:$0xf]
    %v226 = vld [vmem:[#allocation2 + $0x14] sm:$0xf]
    %v227 = vld [vmem:[#allocation2 + $0x18] sm:$0xf]
    %v228 = vld [vmem:[#allocation2 + $0x1c] sm:$0xf]
    %v229 = vld [vmem:[#allocation2 + $0x20] sm:$0xf]
    %v230 = vld [vmem:[#allocation2 + $0x24] sm:$0xf]
    %v231 = vld [vmem:[#allocation2 + $0x28] sm:$0xf]
    %v232 = vld [vmem:[#allocation2 + $0x2c] sm:$0xf]
    %v233 = vld [vmem:[#allocation2 + $0x30] sm:$0xf]
    %v234 = vld [vmem:[#allocation2 + $0x34] sm:$0xf]
    %v235 = vld [vmem:[#allocation2 + $0x38] sm:$0xf]
    %v236 = vld [vmem:[#allocation2 + $0x3c] sm:$0xf]
    %v237 = vld [vmem:[%s4] sm:$0x1]
    %v238 = vpack.c.bf16 %v146, %v146
    %v240 = vlaneseq
    %v241 = vshrl.u32 %v240, 7
    %v242 = vsub.s32 0, %v241
    %v243 = vrot.slane %v237, %v242
    %v261 = vunpack.c.l.b16 %v221
    %v262 = vunpack.c.l.b16 %v222
    %v263 = vunpack.c.l.b16 %v223
    %v264 = vunpack.c.l.b16 %v224
    %v265 = vunpack.c.l.b16 %v225
    %v266 = vunpack.c.l.b16 %v226
    %v267 = vunpack.c.l.b16 %v227
    %v268 = vunpack.c.l.b16 %v228
    %v269 = vunpack.c.l.b16 %v229
    %v270 = vunpack.c.l.b16 %v230
    %v271 = vunpack.c.l.b16 %v231
    %v272 = vunpack.c.l.b16 %v232
    %v273 = vunpack.c.l.b16 %v233
    %v274 = vunpack.c.l.b16 %v234
    %v275 = vunpack.c.l.b16 %v235
    %v276 = vunpack.c.l.b16 %v236
    %v277 = vpack.c.b16 %v262, %v261
    %v278 = vpack.c.b16 %v264, %v263
    %v279 = vpack.c.b16 %v266, %v265
    %v280 = vpack.c.b16 %v268, %v267
    %v281 = vpack.c.b16 %v270, %v269
    %v282 = vpack.c.b16 %v272, %v271
    %v283 = vpack.c.b16 %v274, %v273
    %v284 = vpack.c.b16 %v276, %v275
    %293 = vmatprep.subr.bf16.mxu0 0
    %294 = vmatpush1.bf16.msra.mxu0 %v277
    %295 = vmatprep.subr.bf16.mxu0 0
    %296 = vmatpush1.bf16.msra.mxu0 %v278
    %297 = vmatprep.subr.bf16.mxu0 0
    %298 = vmatpush1.bf16.msra.mxu0 %v279
    %299 = vmatprep.subr.bf16.mxu0 0
    %300 = vmatpush1.bf16.msra.mxu0 %v280
    %301 = vmatprep.subr.bf16.mxu0 0
    %302 = vmatpush1.bf16.msra.mxu0 %v281
    %303 = vmatprep.subr.bf16.mxu0 0
    %304 = vmatpush1.bf16.msra.mxu0 %v282
    %305 = vmatprep.subr.bf16.mxu0 0
    %306 = vmatpush1.bf16.msra.mxu0 %v283
    %307 = vmatprep.subr.bf16.mxu0 0
    %308 = vmatpush1.bf16.msra.mxu0 %v284
    %309 = vmatprep.subr.bf16.mxu0 0
    %310 = vmatpush1.bf16.msra.mxu0 0
    %311 = vmatprep.subr.bf16.mxu0 0
    %312 = vmatpush1.bf16.msra.mxu0 0
    %313 = vmatprep.subr.bf16.mxu0 0
    %314 = vmatpush1.bf16.msra.mxu0 0
    %315 = vmatprep.subr.bf16.mxu0 0
    %316 = vmatpush1.bf16.msra.mxu0 0
    %317 = vmatprep.subr.bf16.mxu0 0
    %318 = vmatpush1.bf16.msra.mxu0 0
    %319 = vmatprep.subr.bf16.mxu0 0
    %320 = vmatpush1.bf16.msra.mxu0 0
    %321 = vmatprep.subr.bf16.mxu0 0
    %322 = vmatpush1.bf16.msra.mxu0 0
    %323 = vmatprep.subr.bf16.mxu0 0
    %324 = vmatpush1.bf16.msra.mxu0 0
    %325 = vmatprep.mubr.bf16.mxu0 0
    %326 = vmatmul.mubr.bf16.gmra.mrb[0].mxu0 %v238
    %v327 = vpop.f32.mrb[0].mxu0
    %v328 = vadd.f32 %v243, %v327
    %v329 = vpop.f32.mrb[0].mxu0
    %v330 = vpop.f32.mrb[0].mxu0
    %v331 = vpop.f32.mrb[0].mxu0
    %332 = vdwg.mxu0
    %v333 = vmax.f32 %v328, 0.0
    %v334 = vpack.c.bf16 %v220, %v220
    %335 = vmatprep.subr.bf16.mxu0 0
    %336 = vmatpush1.bf16.msra.mxu0 %v277
    %337 = vmatprep.subr.bf16.mxu0 0
    %338 = vmatpush1.bf16.msra.mxu0 %v278
    %339 = vmatprep.subr.bf16.mxu0 0
    %340 = vmatpush1.bf16.msra.mxu0 %v279
    %341 = vmatprep.subr.bf16.mxu0 0
    %342 = vmatpush1.bf16.msra.mxu0 %v280
    %343 = vmatprep.subr.bf16.mxu0 0
    %344 = vmatpush1.bf16.msra.mxu0 %v281
    %345 = vmatprep.subr.bf16.mxu0 0
    %346 = vmatpush1.bf16.msra.mxu0 %v282
    %347 = vmatprep.subr.bf16.mxu0 0
    %348 = vmatpush1.bf16.msra.mxu0 %v283
    %349 = vmatprep.subr.bf16.mxu0 0
    %350 = vmatpush1.bf16.msra.mxu0 %v284
    %351 = vmatprep.subr.bf16.mxu0 0
    %352 = vmatpush1.bf16.msra.mxu0 0
    %353 = vmatprep.subr.bf16.mxu0 0
    %354 = vmatpush1.bf16.msra.mxu0 0
    %355 = vmatprep.subr.bf16.mxu0 0
    %356 = vmatpush1.bf16.msra.mxu0 0
    %357 = vmatprep.subr.bf16.mxu0 0
    %358 = vmatpush1.bf16.msra.mxu0 0
    %359 = vmatprep.subr.bf16.mxu0 0
    %360 = vmatpush1.bf16.msra.mxu0 0
    %361 = vmatprep.subr.bf16.mxu0 0
    %362 = vmatpush1.bf16.msra.mxu0 0
    %363 = vmatprep.subr.bf16.mxu0 0
    %364 = vmatpush1.bf16.msra.mxu0 0
    %365 = vmatprep.subr.bf16.mxu0 0
    %366 = vmatpush1.bf16.msra.mxu0 0
    %367 = vmatprep.mubr.bf16.mxu0 0
    %368 = vmatmul.mubr.bf16.gmra.mrb[0].mxu0 %v334
    %v369 = vpop.f32.mrb[0].mxu0
    %v370 = vadd.f32 %v243, %v369
    %v371 = vpop.f32.mrb[0].mxu0
    %v372 = vpop.f32.mrb[0].mxu0
    %v373 = vpop.f32.mrb[0].mxu0
    %374 = vdwg.mxu0
    %v375 = vmax.f32 %v370, 0.0
    %s376 = scalar_lea.vmem [#allocation2], 64
    %v377 = vld [vmem:[%s376] sm:$0xf]
    %v378 = vld [vmem:[%s376 + $0x4] sm:$0xf]
    %v379 = vld [vmem:[%s376 + $0x8] sm:$0xf]
    %v380 = vld [vmem:[%s376 + $0xc] sm:$0xf]
    %v381 = vld [vmem:[%s376 + $0x10] sm:$0xf]
    %v382 = vld [vmem:[%s376 + $0x14] sm:$0xf]
    %v383 = vld [vmem:[%s376 + $0x18] sm:$0xf]
    %v384 = vld [vmem:[%s376 + $0x1c] sm:$0xf]
    %v385 = vld [vmem:[%s376 + $0x20] sm:$0xf]
    %v386 = vld [vmem:[%s376 + $0x24] sm:$0xf]
    %v387 = vld [vmem:[%s376 + $0x28] sm:$0xf]
    %v388 = vld [vmem:[%s376 + $0x2c] sm:$0xf]
    %v389 = vld [vmem:[%s376 + $0x30] sm:$0xf]
    %v390 = vld [vmem:[%s376 + $0x34] sm:$0xf]
    %v391 = vld [vmem:[%s376 + $0x38] sm:$0xf]
    %v392 = vld [vmem:[%s376 + $0x3c] sm:$0xf]
    %s393 = scalar_lea.vmem %s4, 1
    %v394 = vld [vmem:[%s393] sm:$0x1]
    %v395 = vpack.c.bf16 %v333, %v333
    %v397 = vlaneseq
    %v398 = vshrl.u32 %v397, 7
    %v399 = vsub.s32 0, %v398
    %v400 = vrot.slane %v394, %v399
    %v418 = vunpack.c.l.b16 %v377
    %v419 = vunpack.c.l.b16 %v378
    %v420 = vunpack.c.l.b16 %v379
    %v421 = vunpack.c.l.b16 %v380
    %v422 = vunpack.c.l.b16 %v381
    %v423 = vunpack.c.l.b16 %v382
    %v424 = vunpack.c.l.b16 %v383
    %v425 = vunpack.c.l.b16 %v384
    %v426 = vunpack.c.l.b16 %v385
    %v427 = vunpack.c.l.b16 %v386
    %v428 = vunpack.c.l.b16 %v387
    %v429 = vunpack.c.l.b16 %v388
    %v430 = vunpack.c.l.b16 %v389
    %v431 = vunpack.c.l.b16 %v390
    %v432 = vunpack.c.l.b16 %v391
    %v433 = vunpack.c.l.b16 %v392
    %v434 = vpack.c.b16 %v419, %v418
    %v435 = vpack.c.b16 %v421, %v420
    %v436 = vpack.c.b16 %v423, %v422
    %v437 = vpack.c.b16 %v425, %v424
    %v438 = vpack.c.b16 %v427, %v426
    %v439 = vpack.c.b16 %v429, %v428
    %v440 = vpack.c.b16 %v431, %v430
    %v441 = vpack.c.b16 %v433, %v432
    %450 = vmatprep.subr.bf16.mxu0 0
    %451 = vmatpush1.bf16.msra.mxu0 %v434
    %452 = vmatprep.subr.bf16.mxu0 0
    %453 = vmatpush1.bf16.msra.mxu0 %v435
    %454 = vmatprep.subr.bf16.mxu0 0
    %455 = vmatpush1.bf16.msra.mxu0 %v436
    %456 = vmatprep.subr.bf16.mxu0 0
    %457 = vmatpush1.bf16.msra.mxu0 %v437
    %458 = vmatprep.subr.bf16.mxu0 0
    %459 = vmatpush1.bf16.msra.mxu0 %v438
    %460 = vmatprep.subr.bf16.mxu0 0
    %461 = vmatpush1.bf16.msra.mxu0 %v439
    %462 = vmatprep.subr.bf16.mxu0 0
    %463 = vmatpush1.bf16.msra.mxu0 %v440
    %464 = vmatprep.subr.bf16.mxu0 0
    %465 = vmatpush1.bf16.msra.mxu0 %v441
    %466 = vmatprep.subr.bf16.mxu0 0
    %467 = vmatpush1.bf16.msra.mxu0 0
    %468 = vmatprep.subr.bf16.mxu0 0
    %469 = vmatpush1.bf16.msra.mxu0 0
    %470 = vmatprep.subr.bf16.mxu0 0
    %471 = vmatpush1.bf16.msra.mxu0 0
    %472 = vmatprep.subr.bf16.mxu0 0
    %473 = vmatpush1.bf16.msra.mxu0 0
    %474 = vmatprep.subr.bf16.mxu0 0
    %475 = vmatpush1.bf16.msra.mxu0 0
    %476 = vmatprep.subr.bf16.mxu0 0
    %477 = vmatpush1.bf16.msra.mxu0 0
    %478 = vmatprep.subr.bf16.mxu0 0
    %479 = vmatpush1.bf16.msra.mxu0 0
    %480 = vmatprep.subr.bf16.mxu0 0
    %481 = vmatpush1.bf16.msra.mxu0 0
    %482 = vmatprep.mubr.bf16.mxu0 0
    %483 = vmatmul.mubr.bf16.gmra.mrb[0].mxu0 %v395
    %v484 = vpop.f32.mrb[0].mxu0
    %v485 = vadd.f32 %v400, %v484
    %v486 = vpop.f32.mrb[0].mxu0
    %v487 = vpop.f32.mrb[0].mxu0
    %v488 = vpop.f32.mrb[0].mxu0
    %489 = vdwg.mxu0
    %v490 = vmax.f32 %v485, 0.0
    %v491 = vpack.c.bf16 %v375, %v375
    %492 = vmatprep.subr.bf16.mxu0 0
    %493 = vmatpush1.bf16.msra.mxu0 %v434
    %494 = vmatprep.subr.bf16.mxu0 0
    %495 = vmatpush1.bf16.msra.mxu0 %v435
    %496 = vmatprep.subr.bf16.mxu0 0
    %497 = vmatpush1.bf16.msra.mxu0 %v436
    %498 = vmatprep.subr.bf16.mxu0 0
    %499 = vmatpush1.bf16.msra.mxu0 %v437
    %500 = vmatprep.subr.bf16.mxu0 0
    %501 = vmatpush1.bf16.msra.mxu0 %v438
    %502 = vmatprep.subr.bf16.mxu0 0
    %503 = vmatpush1.bf16.msra.mxu0 %v439
    %504 = vmatprep.subr.bf16.mxu0 0
    %505 = vmatpush1.bf16.msra.mxu0 %v440
    %506 = vmatprep.subr.bf16.mxu0 0
    %507 = vmatpush1.bf16.msra.mxu0 %v441
    %508 = vmatprep.subr.bf16.mxu0 0
    %509 = vmatpush1.bf16.msra.mxu0 0
    %510 = vmatprep.subr.bf16.mxu0 0
    %511 = vmatpush1.bf16.msra.mxu0 0
    %512 = vmatprep.subr.bf16.mxu0 0
    %513 = vmatpush1.bf16.msra.mxu0 0
    %514 = vmatprep.subr.bf16.mxu0 0
    %515 = vmatpush1.bf16.msra.mxu0 0
    %516 = vmatprep.subr.bf16.mxu0 0
    %517 = vmatpush1.bf16.msra.mxu0 0
    %518 = vmatprep.subr.bf16.mxu0 0
    %519 = vmatpush1.bf16.msra.mxu0 0
    %520 = vmatprep.subr.bf16.mxu0 0
    %521 = vmatpush1.bf16.msra.mxu0 0
    %522 = vmatprep.subr.bf16.mxu0 0
    %523 = vmatpush1.bf16.msra.mxu0 0
    %524 = vmatprep.mubr.bf16.mxu0 0
    %525 = vmatmul.mubr.bf16.gmra.mrb[0].mxu0 %v491
    %v526 = vpop.f32.mrb[0].mxu0
    %v527 = vadd.f32 %v400, %v526
    %v528 = vpop.f32.mrb[0].mxu0
    %v529 = vpop.f32.mrb[0].mxu0
    %v530 = vpop.f32.mrb[0].mxu0
    %531 = vdwg.mxu0
    %v532 = vmax.f32 %v527, 0.0
    %s533 = scalar_lea.vmem [#allocation2], 128
    %v534 = vld [vmem:[%s533] sm:$0xf]
    %v535 = vld [vmem:[%s533 + $0x4] sm:$0xf]
    %v536 = vld [vmem:[%s533 + $0x8] sm:$0xf]
    %v537 = vld [vmem:[%s533 + $0xc] sm:$0xf]
    %v538 = vld [vmem:[%s533 + $0x10] sm:$0xf]
    %v539 = vld [vmem:[%s533 + $0x14] sm:$0xf]
    %v540 = vld [vmem:[%s533 + $0x18] sm:$0xf]
    %v541 = vld [vmem:[%s533 + $0x1c] sm:$0xf]
    %v542 = vld [vmem:[%s533 + $0x20] sm:$0xf]
    %v543 = vld [vmem:[%s533 + $0x24] sm:$0xf]
    %v544 = vld [vmem:[%s533 + $0x28] sm:$0xf]
    %v545 = vld [vmem:[%s533 + $0x2c] sm:$0xf]
    %v546 = vld [vmem:[%s533 + $0x30] sm:$0xf]
    %v547 = vld [vmem:[%s533 + $0x34] sm:$0xf]
    %v548 = vld [vmem:[%s533 + $0x38] sm:$0xf]
    %v549 = vld [vmem:[%s533 + $0x3c] sm:$0xf]
    %s550 = scalar_lea.vmem %s4, 2
    %v551 = vld [vmem:[%s550] sm:$0x1]
    %v552 = vpack.c.bf16 %v490, %v490
    %v554 = vlaneseq
    %v555 = vshrl.u32 %v554, 7
    %v556 = vsub.s32 0, %v555
    %v557 = vrot.slane %v551, %v556
    %v575 = vunpack.c.l.b16 %v534
    %v576 = vunpack.c.l.b16 %v535
    %v577 = vunpack.c.l.b16 %v536
    %v578 = vunpack.c.l.b16 %v537
    %v579 = vunpack.c.l.b16 %v538
    %v580 = vunpack.c.l.b16 %v539
    %v581 = vunpack.c.l.b16 %v540
    %v582 = vunpack.c.l.b16 %v541
    %v583 = vunpack.c.l.b16 %v542
    %v584 = vunpack.c.l.b16 %v543
    %v585 = vunpack.c.l.b16 %v544
    %v586 = vunpack.c.l.b16 %v545
    %v587 = vunpack.c.l.b16 %v546
    %v588 = vunpack.c.l.b16 %v547
    %v589 = vunpack.c.l.b16 %v548
    %v590 = vunpack.c.l.b16 %v549
    %v591 = vpack.c.b16 %v576, %v575
    %v592 = vpack.c.b16 %v578, %v577
    %v593 = vpack.c.b16 %v580, %v579
    %v594 = vpack.c.b16 %v582, %v581
    %v595 = vpack.c.b16 %v584, %v583
    %v596 = vpack.c.b16 %v586, %v585
    %v597 = vpack.c.b16 %v588, %v587
    %v598 = vpack.c.b16 %v590, %v589
    %607 = vmatprep.subr.bf16.mxu0 0
    %608 = vmatpush1.bf16.msra.mxu0 %v591
    %609 = vmatprep.subr.bf16.mxu0 0
    %610 = vmatpush1.bf16.msra.mxu0 %v592
    %611 = vmatprep.subr.bf16.mxu0 0
    %612 = vmatpush1.bf16.msra.mxu0 %v593
    %613 = vmatprep.subr.bf16.mxu0 0
    %614 = vmatpush1.bf16.msra.mxu0 %v594
    %615 = vmatprep.subr.bf16.mxu0 0
    %616 = vmatpush1.bf16.msra.mxu0 %v595
    %617 = vmatprep.subr.bf16.mxu0 0
    %618 = vmatpush1.bf16.msra.mxu0 %v596
    %619 = vmatprep.subr.bf16.mxu0 0
    %620 = vmatpush1.bf16.msra.mxu0 %v597
    %621 = vmatprep.subr.bf16.mxu0 0
    %622 = vmatpush1.bf16.msra.mxu0 %v598
    %623 = vmatprep.subr.bf16.mxu0 0
    %624 = vmatpush1.bf16.msra.mxu0 0
    %625 = vmatprep.subr.bf16.mxu0 0
    %626 = vmatpush1.bf16.msra.mxu0 0
    %627 = vmatprep.subr.bf16.mxu0 0
    %628 = vmatpush1.bf16.msra.mxu0 0
    %629 = vmatprep.subr.bf16.mxu0 0
    %630 = vmatpush1.bf16.msra.mxu0 0
    %631 = vmatprep.subr.bf16.mxu0 0
    %632 = vmatpush1.bf16.msra.mxu0 0
    %633 = vmatprep.subr.bf16.mxu0 0
    %634 = vmatpush1.bf16.msra.mxu0 0
    %635 = vmatprep.subr.bf16.mxu0 0
    %636 = vmatpush1.bf16.msra.mxu0 0
    %637 = vmatprep.subr.bf16.mxu0 0
    %638 = vmatpush1.bf16.msra.mxu0 0
    %639 = vmatprep.mubr.bf16.mxu0 0
    %640 = vmatmul.mubr.bf16.gmra.mrb[0].mxu0 %v552
    %v641 = vpop.f32.mrb[0].mxu0
    %v642 = vadd.f32 %v557, %v641
    %v643 = vpop.f32.mrb[0].mxu0
    %v644 = vpop.f32.mrb[0].mxu0
    %v645 = vpop.f32.mrb[0].mxu0
    %646 = vdwg.mxu0
    %v647 = vmax.f32 %v642, 0.0
    %v648 = vpack.c.bf16 %v532, %v532
    %649 = vmatprep.subr.bf16.mxu0 0
    %650 = vmatpush1.bf16.msra.mxu0 %v591
    %651 = vmatprep.subr.bf16.mxu0 0
    %652 = vmatpush1.bf16.msra.mxu0 %v592
    %653 = vmatprep.subr.bf16.mxu0 0
    %654 = vmatpush1.bf16.msra.mxu0 %v593
    %655 = vmatprep.subr.bf16.mxu0 0
    %656 = vmatpush1.bf16.msra.mxu0 %v594
    %657 = vmatprep.subr.bf16.mxu0 0
    %658 = vmatpush1.bf16.msra.mxu0 %v595
    %659 = vmatprep.subr.bf16.mxu0 0
    %660 = vmatpush1.bf16.msra.mxu0 %v596
    %661 = vmatprep.subr.bf16.mxu0 0
    %662 = vmatpush1.bf16.msra.mxu0 %v597
    %663 = vmatprep.subr.bf16.mxu0 0
    %664 = vmatpush1.bf16.msra.mxu0 %v598
    %665 = vmatprep.subr.bf16.mxu0 0
    %666 = vmatpush1.bf16.msra.mxu0 0
    %667 = vmatprep.subr.bf16.mxu0 0
    %668 = vmatpush1.bf16.msra.mxu0 0
    %669 = vmatprep.subr.bf16.mxu0 0
    %670 = vmatpush1.bf16.msra.mxu0 0
    %671 = vmatprep.subr.bf16.mxu0 0
    %672 = vmatpush1.bf16.msra.mxu0 0
    %673 = vmatprep.subr.bf16.mxu0 0
    %674 = vmatpush1.bf16.msra.mxu0 0
    %675 = vmatprep.subr.bf16.mxu0 0
    %676 = vmatpush1.bf16.msra.mxu0 0
    %677 = vmatprep.subr.bf16.mxu0 0
    %678 = vmatpush1.bf16.msra.mxu0 0
    %679 = vmatprep.subr.bf16.mxu0 0
    %680 = vmatpush1.bf16.msra.mxu0 0
    %681 = vmatprep.mubr.bf16.mxu0 0
    %682 = vmatmul.mubr.bf16.gmra.mrb[0].mxu0 %v648
    %v683 = vpop.f32.mrb[0].mxu0
    %v684 = vadd.f32 %v557, %v683
    %v685 = vpop.f32.mrb[0].mxu0
    %v686 = vpop.f32.mrb[0].mxu0
    %v687 = vpop.f32.mrb[0].mxu0
    %688 = vdwg.mxu0
    %v689 = vmax.f32 %v684, 0.0
    %s690 = scalar_lea.vmem [#allocation2], 192
    %v691 = vld [vmem:[%s690] sm:$0xf]
    %v692 = vld [vmem:[%s690 + $0x4] sm:$0xf]
    %v693 = vld [vmem:[%s690 + $0x8] sm:$0xf]
    %v694 = vld [vmem:[%s690 + $0xc] sm:$0xf]
    %v695 = vld [vmem:[%s690 + $0x10] sm:$0xf]
    %v696 = vld [vmem:[%s690 + $0x14] sm:$0xf]
    %v697 = vld [vmem:[%s690 + $0x18] sm:$0xf]
    %v698 = vld [vmem:[%s690 + $0x1c] sm:$0xf]
    %v699 = vld [vmem:[%s690 + $0x20] sm:$0xf]
    %v700 = vld [vmem:[%s690 + $0x24] sm:$0xf]
    %v701 = vld [vmem:[%s690 + $0x28] sm:$0xf]
    %v702 = vld [vmem:[%s690 + $0x2c] sm:$0xf]
    %v703 = vld [vmem:[%s690 + $0x30] sm:$0xf]
    %v704 = vld [vmem:[%s690 + $0x34] sm:$0xf]
    %v705 = vld [vmem:[%s690 + $0x38] sm:$0xf]
    %v706 = vld [vmem:[%s690 + $0x3c] sm:$0xf]
    %s707 = scalar_lea.vmem %s4, 3
    %v708 = vld [vmem:[%s707] sm:$0x1]
    %v709 = vpack.c.bf16 %v647, %v647
    %v711 = vlaneseq
    %v712 = vshrl.u32 %v711, 7
    %v713 = vsub.s32 0, %v712
    %v714 = vrot.slane %v708, %v713
    %v732 = vunpack.c.l.b16 %v691
    %v733 = vunpack.c.l.b16 %v692
    %v734 = vunpack.c.l.b16 %v693
    %v735 = vunpack.c.l.b16 %v694
    %v736 = vunpack.c.l.b16 %v695
    %v737 = vunpack.c.l.b16 %v696
    %v738 = vunpack.c.l.b16 %v697
    %v739 = vunpack.c.l.b16 %v698
    %v740 = vunpack.c.l.b16 %v699
    %v741 = vunpack.c.l.b16 %v700
    %v742 = vunpack.c.l.b16 %v701
    %v743 = vunpack.c.l.b16 %v702
    %v744 = vunpack.c.l.b16 %v703
    %v745 = vunpack.c.l.b16 %v704
    %v746 = vunpack.c.l.b16 %v705
    %v747 = vunpack.c.l.b16 %v706
    %v748 = vpack.c.b16 %v733, %v732
    %v749 = vpack.c.b16 %v735, %v734
    %v750 = vpack.c.b16 %v737, %v736
    %v751 = vpack.c.b16 %v739, %v738
    %v752 = vpack.c.b16 %v741, %v740
    %v753 = vpack.c.b16 %v743, %v742
    %v754 = vpack.c.b16 %v745, %v744
    %v755 = vpack.c.b16 %v747, %v746
    %764 = vmatprep.subr.bf16.mxu0 0
    %765 = vmatpush1.bf16.msra.mxu0 %v748
    %766 = vmatprep.subr.bf16.mxu0 0
    %767 = vmatpush1.bf16.msra.mxu0 %v749
    %768 = vmatprep.subr.bf16.mxu0 0
    %769 = vmatpush1.bf16.msra.mxu0 %v750
    %770 = vmatprep.subr.bf16.mxu0 0
    %771 = vmatpush1.bf16.msra.mxu0 %v751
    %772 = vmatprep.subr.bf16.mxu0 0
    %773 = vmatpush1.bf16.msra.mxu0 %v752
    %774 = vmatprep.subr.bf16.mxu0 0
    %775 = vmatpush1.bf16.msra.mxu0 %v753
    %776 = vmatprep.subr.bf16.mxu0 0
    %777 = vmatpush1.bf16.msra.mxu0 %v754
    %778 = vmatprep.subr.bf16.mxu0 0
    %779 = vmatpush1.bf16.msra.mxu0 %v755
    %780 = vmatprep.subr.bf16.mxu0 0
    %781 = vmatpush1.bf16.msra.mxu0 0
    %782 = vmatprep.subr.bf16.mxu0 0
    %783 = vmatpush1.bf16.msra.mxu0 0
    %784 = vmatprep.subr.bf16.mxu0 0
    %785 = vmatpush1.bf16.msra.mxu0 0
    %786 = vmatprep.subr.bf16.mxu0 0
    %787 = vmatpush1.bf16.msra.mxu0 0
    %788 = vmatprep.subr.bf16.mxu0 0
    %789 = vmatpush1.bf16.msra.mxu0 0
    %790 = vmatprep.subr.bf16.mxu0 0
    %791 = vmatpush1.bf16.msra.mxu0 0
    %792 = vmatprep.subr.bf16.mxu0 0
    %793 = vmatpush1.bf16.msra.mxu0 0
    %794 = vmatprep.subr.bf16.mxu0 0
    %795 = vmatpush1.bf16.msra.mxu0 0
    %796 = vmatprep.mubr.bf16.mxu0 0
    %797 = vmatmul.mubr.bf16.gmra.mrb[0].mxu0 %v709
    %v798 = vpop.f32.mrb[0].mxu0
    %v799 = vadd.f32 %v714, %v798
    %v800 = vpop.f32.mrb[0].mxu0
    %v801 = vpop.f32.mrb[0].mxu0
    %v802 = vpop.f32.mrb[0].mxu0
    %803 = vdwg.mxu0
    %v804 = vmax.f32 %v799, 0.0
    %v805 = vpack.c.bf16 %v689, %v689
    %806 = vmatprep.subr.bf16.mxu0 0
    %807 = vmatpush1.bf16.msra.mxu0 %v748
    %808 = vmatprep.subr.bf16.mxu0 0
    %809 = vmatpush1.bf16.msra.mxu0 %v749
    %810 = vmatprep.subr.bf16.mxu0 0
    %811 = vmatpush1.bf16.msra.mxu0 %v750
    %812 = vmatprep.subr.bf16.mxu0 0
    %813 = vmatpush1.bf16.msra.mxu0 %v751
    %814 = vmatprep.subr.bf16.mxu0 0
    %815 = vmatpush1.bf16.msra.mxu0 %v752
    %816 = vmatprep.subr.bf16.mxu0 0
    %817 = vmatpush1.bf16.msra.mxu0 %v753
    %818 = vmatprep.subr.bf16.mxu0 0
    %819 = vmatpush1.bf16.msra.mxu0 %v754
    %820 = vmatprep.subr.bf16.mxu0 0
    %821 = vmatpush1.bf16.msra.mxu0 %v755
    %822 = vmatprep.subr.bf16.mxu0 0
    %823 = vmatpush1.bf16.msra.mxu0 0
    %824 = vmatprep.subr.bf16.mxu0 0
    %825 = vmatpush1.bf16.msra.mxu0 0
    %826 = vmatprep.subr.bf16.mxu0 0
    %827 = vmatpush1.bf16.msra.mxu0 0
    %828 = vmatprep.subr.bf16.mxu0 0
    %829 = vmatpush1.bf16.msra.mxu0 0
    %830 = vmatprep.subr.bf16.mxu0 0
    %831 = vmatpush1.bf16.msra.mxu0 0
    %832 = vmatprep.subr.bf16.mxu0 0
    %833 = vmatpush1.bf16.msra.mxu0 0
    %834 = vmatprep.subr.bf16.mxu0 0
    %835 = vmatpush1.bf16.msra.mxu0 0
    %836 = vmatprep.subr.bf16.mxu0 0
    %837 = vmatpush1.bf16.msra.mxu0 0
    %838 = vmatprep.mubr.bf16.mxu0 0
    %839 = vmatmul.mubr.bf16.gmra.mrb[0].mxu0 %v805
    %v840 = vpop.f32.mrb[0].mxu0
    %v841 = vadd.f32 %v714, %v840
    %v842 = vpop.f32.mrb[0].mxu0
    %v843 = vpop.f32.mrb[0].mxu0
    %v844 = vpop.f32.mrb[0].mxu0
    %845 = vdwg.mxu0
    %v846 = vmax.f32 %v841, 0.0
    %s847 = scalar_lea.vmem [#allocation2], 256
    %v848 = vld [vmem:[%s847] sm:$0xf]
    %v849 = vld [vmem:[%s847 + $0x4] sm:$0xf]
    %v850 = vld [vmem:[%s847 + $0x8] sm:$0xf]
    %v851 = vld [vmem:[%s847 + $0xc] sm:$0xf]
    %v852 = vld [vmem:[%s847 + $0x10] sm:$0xf]
    %v853 = vld [vmem:[%s847 + $0x14] sm:$0xf]
    %v854 = vld [vmem:[%s847 + $0x18] sm:$0xf]
    %v855 = vld [vmem:[%s847 + $0x1c] sm:$0xf]
    %v856 = vld [vmem:[%s847 + $0x20] sm:$0xf]
    %v857 = vld [vmem:[%s847 + $0x24] sm:$0xf]
    %v858 = vld [vmem:[%s847 + $0x28] sm:$0xf]
    %v859 = vld [vmem:[%s847 + $0x2c] sm:$0xf]
    %v860 = vld [vmem:[%s847 + $0x30] sm:$0xf]
    %v861 = vld [vmem:[%s847 + $0x34] sm:$0xf]
    %v862 = vld [vmem:[%s847 + $0x38] sm:$0xf]
    %v863 = vld [vmem:[%s847 + $0x3c] sm:$0xf]
    %s864 = scalar_lea.vmem %s4, 4
    %v865 = vld [vmem:[%s864] sm:$0x1]
    %v866 = vpack.c.bf16 %v804, %v804
    %v868 = vlaneseq
    %v869 = vshrl.u32 %v868, 7
    %v870 = vsub.s32 0, %v869
    %v871 = vrot.slane %v865, %v870
    %v889 = vunpack.c.l.b16 %v848
    %v890 = vunpack.c.l.b16 %v849
    %v891 = vunpack.c.l.b16 %v850
    %v892 = vunpack.c.l.b16 %v851
    %v893 = vunpack.c.l.b16 %v852
    %v894 = vunpack.c.l.b16 %v853
    %v895 = vunpack.c.l.b16 %v854
    %v896 = vunpack.c.l.b16 %v855
    %v897 = vunpack.c.l.b16 %v856
    %v898 = vunpack.c.l.b16 %v857
    %v899 = vunpack.c.l.b16 %v858
    %v900 = vunpack.c.l.b16 %v859
    %v901 = vunpack.c.l.b16 %v860
    %v902 = vunpack.c.l.b16 %v861
    %v903 = vunpack.c.l.b16 %v862
    %v904 = vunpack.c.l.b16 %v863
    %v905 = vpack.c.b16 %v890, %v889
    %v906 = vpack.c.b16 %v892, %v891
    %v907 = vpack.c.b16 %v894, %v893
    %v908 = vpack.c.b16 %v896, %v895
    %v909 = vpack.c.b16 %v898, %v897
    %v910 = vpack.c.b16 %v900, %v899
    %v911 = vpack.c.b16 %v902, %v901
    %v912 = vpack.c.b16 %v904, %v903
    %921 = vmatprep.subr.bf16.mxu0 0
    %922 = vmatpush1.bf16.msra.mxu0 %v905
    %923 = vmatprep.subr.bf16.mxu0 0
    %924 = vmatpush1.bf16.msra.mxu0 %v906
    %925 = vmatprep.subr.bf16.mxu0 0
    %926 = vmatpush1.bf16.msra.mxu0 %v907
    %927 = vmatprep.subr.bf16.mxu0 0
    %928 = vmatpush1.bf16.msra.mxu0 %v908
    %929 = vmatprep.subr.bf16.mxu0 0
    %930 = vmatpush1.bf16.msra.mxu0 %v909
    %931 = vmatprep.subr.bf16.mxu0 0
    %932 = vmatpush1.bf16.msra.mxu0 %v910
    %933 = vmatprep.subr.bf16.mxu0 0
    %934 = vmatpush1.bf16.msra.mxu0 %v911
    %935 = vmatprep.subr.bf16.mxu0 0
    %936 = vmatpush1.bf16.msra.mxu0 %v912
    %937 = vmatprep.subr.bf16.mxu0 0
    %938 = vmatpush1.bf16.msra.mxu0 0
    %939 = vmatprep.subr.bf16.mxu0 0
    %940 = vmatpush1.bf16.msra.mxu0 0
    %941 = vmatprep.subr.bf16.mxu0 0
    %942 = vmatpush1.bf16.msra.mxu0 0
    %943 = vmatprep.subr.bf16.mxu0 0
    %944 = vmatpush1.bf16.msra.mxu0 0
    %945 = vmatprep.subr.bf16.mxu0 0
    %946 = vmatpush1.bf16.msra.mxu0 0
    %947 = vmatprep.subr.bf16.mxu0 0
    %948 = vmatpush1.bf16.msra.mxu0 0
    %949 = vmatprep.subr.bf16.mxu0 0
    %950 = vmatpush1.bf16.msra.mxu0 0
    %951 = vmatprep.subr.bf16.mxu0 0
    %952 = vmatpush1.bf16.msra.mxu0 0
    %953 = vmatprep.mubr.bf16.mxu0 0
    %954 = vmatmul.mubr.bf16.gmra.mrb[0].mxu0 %v866
    %v955 = vpop.f32.mrb[0].mxu0
    %v956 = vadd.f32 %v871, %v955
    %v957 = vpop.f32.mrb[0].mxu0
    %v958 = vpop.f32.mrb[0].mxu0
    %v959 = vpop.f32.mrb[0].mxu0
    %960 = vdwg.mxu0
    %v961 = vmax.f32 %v956, 0.0
    %v962 = vpack.c.bf16 %v846, %v846
    %963 = vmatprep.subr.bf16.mxu0 0
    %964 = vmatpush1.bf16.msra.mxu0 %v905
    %965 = vmatprep.subr.bf16.mxu0 0
    %966 = vmatpush1.bf16.msra.mxu0 %v906
    %967 = vmatprep.subr.bf16.mxu0 0
    %968 = vmatpush1.bf16.msra.mxu0 %v907
    %969 = vmatprep.subr.bf16.mxu0 0
    %970 = vmatpush1.bf16.msra.mxu0 %v908
    %971 = vmatprep.subr.bf16.mxu0 0
    %972 = vmatpush1.bf16.msra.mxu0 %v909
    %973 = vmatprep.subr.bf16.mxu0 0
    %974 = vmatpush1.bf16.msra.mxu0 %v910
    %975 = vmatprep.subr.bf16.mxu0 0
    %976 = vmatpush1.bf16.msra.mxu0 %v911
    %977 = vmatprep.subr.bf16.mxu0 0
    %978 = vmatpush1.bf16.msra.mxu0 %v912
    %979 = vmatprep.subr.bf16.mxu0 0
    %980 = vmatpush1.bf16.msra.mxu0 0
    %981 = vmatprep.subr.bf16.mxu0 0
    %982 = vmatpush1.bf16.msra.mxu0 0
    %983 = vmatprep.subr.bf16.mxu0 0
    %984 = vmatpush1.bf16.msra.mxu0 0
    %985 = vmatprep.subr.bf16.mxu0 0
    %986 = vmatpush1.bf16.msra.mxu0 0
    %987 = vmatprep.subr.bf16.mxu0 0
    %988 = vmatpush1.bf16.msra.mxu0 0
    %989 = vmatprep.subr.bf16.mxu0 0
    %990 = vmatpush1.bf16.msra.mxu0 0
    %991 = vmatprep.subr.bf16.mxu0 0
    %992 = vmatpush1.bf16.msra.mxu0 0
    %993 = vmatprep.subr.bf16.mxu0 0
    %994 = vmatpush1.bf16.msra.mxu0 0
    %995 = vmatprep.mubr.bf16.mxu0 0
    %996 = vmatmul.mubr.bf16.gmra.mrb[0].mxu0 %v962
    %v997 = vpop.f32.mrb[0].mxu0
    %v998 = vadd.f32 %v871, %v997
    %v999 = vpop.f32.mrb[0].mxu0
    %v1000 = vpop.f32.mrb[0].mxu0
    %v1001 = vpop.f32.mrb[0].mxu0
    %1002 = vdwg.mxu0
    %v1003 = vmax.f32 %v998, 0.0
    %s1004 = scalar_lea.vmem [#allocation2], 320
    %v1005 = vld [vmem:[%s1004] sm:$0xf]
    %v1006 = vld [vmem:[%s1004 + $0x4] sm:$0xf]
    %v1007 = vld [vmem:[%s1004 + $0x8] sm:$0xf]
    %v1008 = vld [vmem:[%s1004 + $0xc] sm:$0xf]
    %v1009 = vld [vmem:[%s1004 + $0x10] sm:$0xf]
    %v1010 = vld [vmem:[%s1004 + $0x14] sm:$0xf]
    %v1011 = vld [vmem:[%s1004 + $0x18] sm:$0xf]
    %v1012 = vld [vmem:[%s1004 + $0x1c] sm:$0xf]
    %v1013 = vld [vmem:[%s1004 + $0x20] sm:$0xf]
    %v1014 = vld [vmem:[%s1004 + $0x24] sm:$0xf]
    %v1015 = vld [vmem:[%s1004 + $0x28] sm:$0xf]
    %v1016 = vld [vmem:[%s1004 + $0x2c] sm:$0xf]
    %v1017 = vld [vmem:[%s1004 + $0x30] sm:$0xf]
    %v1018 = vld [vmem:[%s1004 + $0x34] sm:$0xf]
    %v1019 = vld [vmem:[%s1004 + $0x38] sm:$0xf]
    %v1020 = vld [vmem:[%s1004 + $0x3c] sm:$0xf]
    %s1021 = scalar_lea.vmem %s4, 5
    %v1022 = vld [vmem:[%s1021] sm:$0x1]
    %v1023 = vpack.c.bf16 %v961, %v961
    %v1025 = vlaneseq
    %v1026 = vshrl.u32 %v1025, 7
    %v1027 = vsub.s32 0, %v1026
    %v1028 = vrot.slane %v1022, %v1027
    %v1046 = vunpack.c.l.b16 %v1005
    %v1047 = vunpack.c.l.b16 %v1006
    %v1048 = vunpack.c.l.b16 %v1007
    %v1049 = vunpack.c.l.b16 %v1008
    %v1050 = vunpack.c.l.b16 %v1009
    %v1051 = vunpack.c.l.b16 %v1010
    %v1052 = vunpack.c.l.b16 %v1011
    %v1053 = vunpack.c.l.b16 %v1012
    %v1054 = vunpack.c.l.b16 %v1013
    %v1055 = vunpack.c.l.b16 %v1014
    %v1056 = vunpack.c.l.b16 %v1015
    %v1057 = vunpack.c.l.b16 %v1016
    %v1058 = vunpack.c.l.b16 %v1017
    %v1059 = vunpack.c.l.b16 %v1018
    %v1060 = vunpack.c.l.b16 %v1019
    %v1061 = vunpack.c.l.b16 %v1020
    %v1062 = vpack.c.b16 %v1047, %v1046
    %v1063 = vpack.c.b16 %v1049, %v1048
    %v1064 = vpack.c.b16 %v1051, %v1050
    %v1065 = vpack.c.b16 %v1053, %v1052
    %v1066 = vpack.c.b16 %v1055, %v1054
    %v1067 = vpack.c.b16 %v1057, %v1056
    %v1068 = vpack.c.b16 %v1059, %v1058
    %v1069 = vpack.c.b16 %v1061, %v1060
    %1078 = vmatprep.subr.bf16.mxu0 0
    %1079 = vmatpush1.bf16.msra.mxu0 %v1062
    %1080 = vmatprep.subr.bf16.mxu0 0
    %1081 = vmatpush1.bf16.msra.mxu0 %v1063
    %1082 = vmatprep.subr.bf16.mxu0 0
    %1083 = vmatpush1.bf16.msra.mxu0 %v1064
    %1084 = vmatprep.subr.bf16.mxu0 0
    %1085 = vmatpush1.bf16.msra.mxu0 %v1065
    %1086 = vmatprep.subr.bf16.mxu0 0
    %1087 = vmatpush1.bf16.msra.mxu0 %v1066
    %1088 = vmatprep.subr.bf16.mxu0 0
    %1089 = vmatpush1.bf16.msra.mxu0 %v1067
    %1090 = vmatprep.subr.bf16.mxu0 0
    %1091 = vmatpush1.bf16.msra.mxu0 %v1068
    %1092 = vmatprep.subr.bf16.mxu0 0
    %1093 = vmatpush1.bf16.msra.mxu0 %v1069
    %1094 = vmatprep.subr.bf16.mxu0 0
    %1095 = vmatpush1.bf16.msra.mxu0 0
    %1096 = vmatprep.subr.bf16.mxu0 0
    %1097 = vmatpush1.bf16.msra.mxu0 0
    %1098 = vmatprep.subr.bf16.mxu0 0
    %1099 = vmatpush1.bf16.msra.mxu0 0
    %1100 = vmatprep.subr.bf16.mxu0 0
    %1101 = vmatpush1.bf16.msra.mxu0 0
    %1102 = vmatprep.subr.bf16.mxu0 0
    %1103 = vmatpush1.bf16.msra.mxu0 0
    %1104 = vmatprep.subr.bf16.mxu0 0
    %1105 = vmatpush1.bf16.msra.mxu0 0
    %1106 = vmatprep.subr.bf16.mxu0 0
    %1107 = vmatpush1.bf16.msra.mxu0 0
    %1108 = vmatprep.subr.bf16.mxu0 0
    %1109 = vmatpush1.bf16.msra.mxu0 0
    %1110 = vmatprep.mubr.bf16.mxu0 0
    %1111 = vmatmul.mubr.bf16.gmra.mrb[0].mxu0 %v1023
    %v1112 = vpop.f32.mrb[0].mxu0
    %v1113 = vadd.f32 %v1028, %v1112
    %v1114 = vpop.f32.mrb[0].mxu0
    %v1115 = vpop.f32.mrb[0].mxu0
    %v1116 = vpop.f32.mrb[0].mxu0
    %1117 = vdwg.mxu0
    %v1118 = vmax.f32 %v1113, 0.0
    %v1119 = vpack.c.bf16 %v1003, %v1003
    %1120 = vmatprep.subr.bf16.mxu0 0
    %1121 = vmatpush1.bf16.msra.mxu0 %v1062
    %1122 = vmatprep.subr.bf16.mxu0 0
    %1123 = vmatpush1.bf16.msra.mxu0 %v1063
    %1124 = vmatprep.subr.bf16.mxu0 0
    %1125 = vmatpush1.bf16.msra.mxu0 %v1064
    %1126 = vmatprep.subr.bf16.mxu0 0
    %1127 = vmatpush1.bf16.msra.mxu0 %v1065
    %1128 = vmatprep.subr.bf16.mxu0 0
    %1129 = vmatpush1.bf16.msra.mxu0 %v1066
    %1130 = vmatprep.subr.bf16.mxu0 0
    %1131 = vmatpush1.bf16.msra.mxu0 %v1067
    %1132 = vmatprep.subr.bf16.mxu0 0
    %1133 = vmatpush1.bf16.msra.mxu0 %v1068
    %1134 = vmatprep.subr.bf16.mxu0 0
    %1135 = vmatpush1.bf16.msra.mxu0 %v1069
    %1136 = vmatprep.subr.bf16.mxu0 0
    %1137 = vmatpush1.bf16.msra.mxu0 0
    %1138 = vmatprep.subr.bf16.mxu0 0
    %1139 = vmatpush1.bf16.msra.mxu0 0
    %1140 = vmatprep.subr.bf16.mxu0 0
    %1141 = vmatpush1.bf16.msra.mxu0 0
    %1142 = vmatprep.subr.bf16.mxu0 0
    %1143 = vmatpush1.bf16.msra.mxu0 0
    %1144 = vmatprep.subr.bf16.mxu0 0
    %1145 = vmatpush1.bf16.msra.mxu0 0
    %1146 = vmatprep.subr.bf16.mxu0 0
    %1147 = vmatpush1.bf16.msra.mxu0 0
    %1148 = vmatprep.subr.bf16.mxu0 0
    %1149 = vmatpush1.bf16.msra.mxu0 0
    %1150 = vmatprep.subr.bf16.mxu0 0
    %1151 = vmatpush1.bf16.msra.mxu0 0
    %1152 = vmatprep.mubr.bf16.mxu0 0
    %1153 = vmatmul.mubr.bf16.gmra.mrb[0].mxu0 %v1119
    %v1154 = vpop.f32.mrb[0].mxu0
    %v1155 = vadd.f32 %v1028, %v1154
    %v1156 = vpop.f32.mrb[0].mxu0
    %v1157 = vpop.f32.mrb[0].mxu0
    %v1158 = vpop.f32.mrb[0].mxu0
    %1159 = vdwg.mxu0
    %v1160 = vmax.f32 %v1155, 0.0
    %s1161 = scalar_lea.vmem [#allocation2], 384
    %v1162 = vld [vmem:[%s1161] sm:$0xf]
    %v1163 = vld [vmem:[%s1161 + $0x4] sm:$0xf]
    %v1164 = vld [vmem:[%s1161 + $0x8] sm:$0xf]
    %v1165 = vld [vmem:[%s1161 + $0xc] sm:$0xf]
    %v1166 = vld [vmem:[%s1161 + $0x10] sm:$0xf]
    %v1167 = vld [vmem:[%s1161 + $0x14] sm:$0xf]
    %v1168 = vld [vmem:[%s1161 + $0x18] sm:$0xf]
    %v1169 = vld [vmem:[%s1161 + $0x1c] sm:$0xf]
    %v1170 = vld [vmem:[%s1161 + $0x20] sm:$0xf]
    %v1171 = vld [vmem:[%s1161 + $0x24] sm:$0xf]
    %v1172 = vld [vmem:[%s1161 + $0x28] sm:$0xf]
    %v1173 = vld [vmem:[%s1161 + $0x2c] sm:$0xf]
    %v1174 = vld [vmem:[%s1161 + $0x30] sm:$0xf]
    %v1175 = vld [vmem:[%s1161 + $0x34] sm:$0xf]
    %v1176 = vld [vmem:[%s1161 + $0x38] sm:$0xf]
    %v1177 = vld [vmem:[%s1161 + $0x3c] sm:$0xf]
    %s1178 = scalar_lea.vmem %s4, 6
    %v1179 = vld [vmem:[%s1178] sm:$0x1]
    %v1180 = vpack.c.bf16 %v1118, %v1118
    %v1182 = vlaneseq
    %v1183 = vshrl.u32 %v1182, 7
    %v1184 = vsub.s32 0, %v1183
    %v1185 = vrot.slane %v1179, %v1184
    %v1203 = vunpack.c.l.b16 %v1162
    %v1204 = vunpack.c.l.b16 %v1163
    %v1205 = vunpack.c.l.b16 %v1164
    %v1206 = vunpack.c.l.b16 %v1165
    %v1207 = vunpack.c.l.b16 %v1166
    %v1208 = vunpack.c.l.b16 %v1167
    %v1209 = vunpack.c.l.b16 %v1168
    %v1210 = vunpack.c.l.b16 %v1169
    %v1211 = vunpack.c.l.b16 %v1170
    %v1212 = vunpack.c.l.b16 %v1171
    %v1213 = vunpack.c.l.b16 %v1172
    %v1214 = vunpack.c.l.b16 %v1173
    %v1215 = vunpack.c.l.b16 %v1174
    %v1216 = vunpack.c.l.b16 %v1175
    %v1217 = vunpack.c.l.b16 %v1176
    %v1218 = vunpack.c.l.b16 %v1177
    %v1219 = vpack.c.b16 %v1204, %v1203
    %v1220 = vpack.c.b16 %v1206, %v1205
    %v1221 = vpack.c.b16 %v1208, %v1207
    %v1222 = vpack.c.b16 %v1210, %v1209
    %v1223 = vpack.c.b16 %v1212, %v1211
    %v1224 = vpack.c.b16 %v1214, %v1213
    %v1225 = vpack.c.b16 %v1216, %v1215
    %v1226 = vpack.c.b16 %v1218, %v1217
    %1235 = vmatprep.subr.bf16.mxu0 0
    %1236 = vmatpush1.bf16.msra.mxu0 %v1219
    %1237 = vmatprep.subr.bf16.mxu0 0
    %1238 = vmatpush1.bf16.msra.mxu0 %v1220
    %1239 = vmatprep.subr.bf16.mxu0 0
    %1240 = vmatpush1.bf16.msra.mxu0 %v1221
    %1241 = vmatprep.subr.bf16.mxu0 0
    %1242 = vmatpush1.bf16.msra.mxu0 %v1222
    %1243 = vmatprep.subr.bf16.mxu0 0
    %1244 = vmatpush1.bf16.msra.mxu0 %v1223
    %1245 = vmatprep.subr.bf16.mxu0 0
    %1246 = vmatpush1.bf16.msra.mxu0 %v1224
    %1247 = vmatprep.subr.bf16.mxu0 0
    %1248 = vmatpush1.bf16.msra.mxu0 %v1225
    %1249 = vmatprep.subr.bf16.mxu0 0
    %1250 = vmatpush1.bf16.msra.mxu0 %v1226
    %1251 = vmatprep.subr.bf16.mxu0 0
    %1252 = vmatpush1.bf16.msra.mxu0 0
    %1253 = vmatprep.subr.bf16.mxu0 0
    %1254 = vmatpush1.bf16.msra.mxu0 0
    %1255 = vmatprep.subr.bf16.mxu0 0
    %1256 = vmatpush1.bf16.msra.mxu0 0
    %1257 = vmatprep.subr.bf16.mxu0 0
    %1258 = vmatpush1.bf16.msra.mxu0 0
    %1259 = vmatprep.subr.bf16.mxu0 0
    %1260 = vmatpush1.bf16.msra.mxu0 0
    %1261 = vmatprep.subr.bf16.mxu0 0
    %1262 = vmatpush1.bf16.msra.mxu0 0
    %1263 = vmatprep.subr.bf16.mxu0 0
    %1264 = vmatpush1.bf16.msra.mxu0 0
    %1265 = vmatprep.subr.bf16.mxu0 0
    %1266 = vmatpush1.bf16.msra.mxu0 0
    %1267 = vmatprep.mubr.bf16.mxu0 0
    %1268 = vmatmul.mubr.bf16.gmra.mrb[0].mxu0 %v1180
    %v1269 = vpop.f32.mrb[0].mxu0
    %v1270 = vadd.f32 %v1185, %v1269
    %v1271 = vpop.f32.mrb[0].mxu0
    %v1272 = vpop.f32.mrb[0].mxu0
    %v1273 = vpop.f32.mrb[0].mxu0
    %1274 = vdwg.mxu0
    %v1275 = vmax.f32 %v1270, 0.0
    %v1276 = vpack.c.bf16 %v1160, %v1160
    %1277 = vmatprep.subr.bf16.mxu0 0
    %1278 = vmatpush1.bf16.msra.mxu0 %v1219
    %1279 = vmatprep.subr.bf16.mxu0 0
    %1280 = vmatpush1.bf16.msra.mxu0 %v1220
    %1281 = vmatprep.subr.bf16.mxu0 0
    %1282 = vmatpush1.bf16.msra.mxu0 %v1221
    %1283 = vmatprep.subr.bf16.mxu0 0
    %1284 = vmatpush1.bf16.msra.mxu0 %v1222
    %1285 = vmatprep.subr.bf16.mxu0 0
    %1286 = vmatpush1.bf16.msra.mxu0 %v1223
    %1287 = vmatprep.subr.bf16.mxu0 0
    %1288 = vmatpush1.bf16.msra.mxu0 %v1224
    %1289 = vmatprep.subr.bf16.mxu0 0
    %1290 = vmatpush1.bf16.msra.mxu0 %v1225
    %1291 = vmatprep.subr.bf16.mxu0 0
    %1292 = vmatpush1.bf16.msra.mxu0 %v1226
    %1293 = vmatprep.subr.bf16.mxu0 0
    %1294 = vmatpush1.bf16.msra.mxu0 0
    %1295 = vmatprep.subr.bf16.mxu0 0
    %1296 = vmatpush1.bf16.msra.mxu0 0
    %1297 = vmatprep.subr.bf16.mxu0 0
    %1298 = vmatpush1.bf16.msra.mxu0 0
    %1299 = vmatprep.subr.bf16.mxu0 0
    %1300 = vmatpush1.bf16.msra.mxu0 0
    %1301 = vmatprep.subr.bf16.mxu0 0
    %1302 = vmatpush1.bf16.msra.mxu0 0
    %1303 = vmatprep.subr.bf16.mxu0 0
    %1304 = vmatpush1.bf16.msra.mxu0 0
    %1305 = vmatprep.subr.bf16.mxu0 0
    %1306 = vmatpush1.bf16.msra.mxu0 0
    %1307 = vmatprep.subr.bf16.mxu0 0
    %1308 = vmatpush1.bf16.msra.mxu0 0
    %1309 = vmatprep.mubr.bf16.mxu0 0
    %1310 = vmatmul.mubr.bf16.gmra.mrb[0].mxu0 %v1276
    %v1311 = vpop.f32.mrb[0].mxu0
    %v1312 = vadd.f32 %v1185, %v1311
    %v1313 = vpop.f32.mrb[0].mxu0
    %v1314 = vpop.f32.mrb[0].mxu0
    %v1315 = vpop.f32.mrb[0].mxu0
    %1316 = vdwg.mxu0
    %v1317 = vmax.f32 %v1312, 0.0
    %s1318 = scalar_lea.vmem [#allocation2], 448
    %v1319 = vld [vmem:[%s1318] sm:$0xf]
    %v1320 = vld [vmem:[%s1318 + $0x4] sm:$0xf]
    %v1321 = vld [vmem:[%s1318 + $0x8] sm:$0xf]
    %v1322 = vld [vmem:[%s1318 + $0xc] sm:$0xf]
    %v1323 = vld [vmem:[%s1318 + $0x10] sm:$0xf]
    %v1324 = vld [vmem:[%s1318 + $0x14] sm:$0xf]
    %v1325 = vld [vmem:[%s1318 + $0x18] sm:$0xf]
    %v1326 = vld [vmem:[%s1318 + $0x1c] sm:$0xf]
    %v1327 = vld [vmem:[%s1318 + $0x20] sm:$0xf]
    %v1328 = vld [vmem:[%s1318 + $0x24] sm:$0xf]
    %v1329 = vld [vmem:[%s1318 + $0x28] sm:$0xf]
    %v1330 = vld [vmem:[%s1318 + $0x2c] sm:$0xf]
    %v1331 = vld [vmem:[%s1318 + $0x30] sm:$0xf]
    %v1332 = vld [vmem:[%s1318 + $0x34] sm:$0xf]
    %v1333 = vld [vmem:[%s1318 + $0x38] sm:$0xf]
    %v1334 = vld [vmem:[%s1318 + $0x3c] sm:$0xf]
    %s1335 = scalar_lea.vmem %s4, 7
    %v1336 = vld [vmem:[%s1335] sm:$0x1]
    %v1337 = vpack.c.bf16 %v1275, %v1275
    %v1339 = vlaneseq
    %v1340 = vshrl.u32 %v1339, 7
    %v1341 = vsub.s32 0, %v1340
    %v1342 = vrot.slane %v1336, %v1341
    %v1360 = vunpack.c.l.b16 %v1319
    %v1361 = vunpack.c.l.b16 %v1320
    %v1362 = vunpack.c.l.b16 %v1321
    %v1363 = vunpack.c.l.b16 %v1322
    %v1364 = vunpack.c.l.b16 %v1323
    %v1365 = vunpack.c.l.b16 %v1324
    %v1366 = vunpack.c.l.b16 %v1325
    %v1367 = vunpack.c.l.b16 %v1326
    %v1368 = vunpack.c.l.b16 %v1327
    %v1369 = vunpack.c.l.b16 %v1328
    %v1370 = vunpack.c.l.b16 %v1329
    %v1371 = vunpack.c.l.b16 %v1330
    %v1372 = vunpack.c.l.b16 %v1331
    %v1373 = vunpack.c.l.b16 %v1332
    %v1374 = vunpack.c.l.b16 %v1333
    %v1375 = vunpack.c.l.b16 %v1334
    %v1376 = vpack.c.b16 %v1361, %v1360
    %v1377 = vpack.c.b16 %v1363, %v1362
    %v1378 = vpack.c.b16 %v1365, %v1364
    %v1379 = vpack.c.b16 %v1367, %v1366
    %v1380 = vpack.c.b16 %v1369, %v1368
    %v1381 = vpack.c.b16 %v1371, %v1370
    %v1382 = vpack.c.b16 %v1373, %v1372
    %v1383 = vpack.c.b16 %v1375, %v1374
    %1392 = vmatprep.subr.bf16.mxu0 0
    %1393 = vmatpush1.bf16.msra.mxu0 %v1376
    %1394 = vmatprep.subr.bf16.mxu0 0
    %1395 = vmatpush1.bf16.msra.mxu0 %v1377
    %1396 = vmatprep.subr.bf16.mxu0 0
    %1397 = vmatpush1.bf16.msra.mxu0 %v1378
    %1398 = vmatprep.subr.bf16.mxu0 0
    %1399 = vmatpush1.bf16.msra.mxu0 %v1379
    %1400 = vmatprep.subr.bf16.mxu0 0
    %1401 = vmatpush1.bf16.msra.mxu0 %v1380
    %1402 = vmatprep.subr.bf16.mxu0 0
    %1403 = vmatpush1.bf16.msra.mxu0 %v1381
    %1404 = vmatprep.subr.bf16.mxu0 0
    %1405 = vmatpush1.bf16.msra.mxu0 %v1382
    %1406 = vmatprep.subr.bf16.mxu0 0
    %1407 = vmatpush1.bf16.msra.mxu0 %v1383
    %1408 = vmatprep.subr.bf16.mxu0 0
    %1409 = vmatpush1.bf16.msra.mxu0 0
    %1410 = vmatprep.subr.bf16.mxu0 0
    %1411 = vmatpush1.bf16.msra.mxu0 0
    %1412 = vmatprep.subr.bf16.mxu0 0
    %1413 = vmatpush1.bf16.msra.mxu0 0
    %1414 = vmatprep.subr.bf16.mxu0 0
    %1415 = vmatpush1.bf16.msra.mxu0 0
    %1416 = vmatprep.subr.bf16.mxu0 0
    %1417 = vmatpush1.bf16.msra.mxu0 0
    %1418 = vmatprep.subr.bf16.mxu0 0
    %1419 = vmatpush1.bf16.msra.mxu0 0
    %1420 = vmatprep.subr.bf16.mxu0 0
    %1421 = vmatpush1.bf16.msra.mxu0 0
    %1422 = vmatprep.subr.bf16.mxu0 0
    %1423 = vmatpush1.bf16.msra.mxu0 0
    %1424 = vmatprep.mubr.bf16.mxu0 0
    %1425 = vmatmul.mubr.bf16.gmra.mrb[0].mxu0 %v1337
    %v1426 = vpop.f32.mrb[0].mxu0
    %v1427 = vadd.f32 %v1342, %v1426
    %v1428 = vpop.f32.mrb[0].mxu0
    %v1429 = vpop.f32.mrb[0].mxu0
    %v1430 = vpop.f32.mrb[0].mxu0
    %1431 = vdwg.mxu0
    %v1432 = vmax.f32 %v1427, 0.0
    %v1433 = vpack.c.bf16 %v1317, %v1317
    %1434 = vmatprep.subr.bf16.mxu0 0
    %1435 = vmatpush1.bf16.msra.mxu0 %v1376
    %1436 = vmatprep.subr.bf16.mxu0 0
    %1437 = vmatpush1.bf16.msra.mxu0 %v1377
    %1438 = vmatprep.subr.bf16.mxu0 0
    %1439 = vmatpush1.bf16.msra.mxu0 %v1378
    %1440 = vmatprep.subr.bf16.mxu0 0
    %1441 = vmatpush1.bf16.msra.mxu0 %v1379
    %1442 = vmatprep.subr.bf16.mxu0 0
    %1443 = vmatpush1.bf16.msra.mxu0 %v1380
    %1444 = vmatprep.subr.bf16.mxu0 0
    %1445 = vmatpush1.bf16.msra.mxu0 %v1381
    %1446 = vmatprep.subr.bf16.mxu0 0
    %1447 = vmatpush1.bf16.msra.mxu0 %v1382
    %1448 = vmatprep.subr.bf16.mxu0 0
    %1449 = vmatpush1.bf16.msra.mxu0 %v1383
    %1450 = vmatprep.subr.bf16.mxu0 0
    %1451 = vmatpush1.bf16.msra.mxu0 0
    %1452 = vmatprep.subr.bf16.mxu0 0
    %1453 = vmatpush1.bf16.msra.mxu0 0
    %1454 = vmatprep.subr.bf16.mxu0 0
    %1455 = vmatpush1.bf16.msra.mxu0 0
    %1456 = vmatprep.subr.bf16.mxu0 0
    %1457 = vmatpush1.bf16.msra.mxu0 0
    %1458 = vmatprep.subr.bf16.mxu0 0
    %1459 = vmatpush1.bf16.msra.mxu0 0
    %1460 = vmatprep.subr.bf16.mxu0 0
    %1461 = vmatpush1.bf16.msra.mxu0 0
    %1462 = vmatprep.subr.bf16.mxu0 0
    %1463 = vmatpush1.bf16.msra.mxu0 0
    %1464 = vmatprep.subr.bf16.mxu0 0
    %1465 = vmatpush1.bf16.msra.mxu0 0
    %1466 = vmatprep.mubr.bf16.mxu0 0
    %1467 = vmatmul.mubr.bf16.gmra.mrb[0].mxu0 %v1433
    %v1468 = vpop.f32.mrb[0].mxu0
    %v1469 = vadd.f32 %v1342, %v1468
    %v1470 = vpop.f32.mrb[0].mxu0
    %v1471 = vpop.f32.mrb[0].mxu0
    %v1472 = vpop.f32.mrb[0].mxu0
    %1473 = vdwg.mxu0
    %v1474 = vmax.f32 %v1469, 0.0
    %s1475 = scalar_lea.vmem [#allocation2], 512
    %v1476 = vld [vmem:[%s1475] sm:$0xf]
    %v1477 = vld [vmem:[%s1475 + $0x4] sm:$0xf]
    %v1478 = vld [vmem:[%s1475 + $0x8] sm:$0xf]
    %v1479 = vld [vmem:[%s1475 + $0xc] sm:$0xf]
    %v1480 = vld [vmem:[%s1475 + $0x10] sm:$0xf]
    %v1481 = vld [vmem:[%s1475 + $0x14] sm:$0xf]
    %v1482 = vld [vmem:[%s1475 + $0x18] sm:$0xf]
    %v1483 = vld [vmem:[%s1475 + $0x1c] sm:$0xf]
    %v1484 = vld [vmem:[%s1475 + $0x20] sm:$0xf]
    %v1485 = vld [vmem:[%s1475 + $0x24] sm:$0xf]
    %v1486 = vld [vmem:[%s1475 + $0x28] sm:$0xf]
    %v1487 = vld [vmem:[%s1475 + $0x2c] sm:$0xf]
    %v1488 = vld [vmem:[%s1475 + $0x30] sm:$0xf]
    %v1489 = vld [vmem:[%s1475 + $0x34] sm:$0xf]
    %v1490 = vld [vmem:[%s1475 + $0x38] sm:$0xf]
    %v1491 = vld [vmem:[%s1475 + $0x3c] sm:$0xf]
    %s1492 = scalar_lea.vmem %s4, 8
    %v1493 = vld [vmem:[%s1492] sm:$0x1]
    %v1494 = vpack.c.bf16 %v1432, %v1432
    %v1496 = vlaneseq
    %v1497 = vshrl.u32 %v1496, 7
    %v1498 = vsub.s32 0, %v1497
    %v1499 = vrot.slane %v1493, %v1498
    %v1517 = vunpack.c.l.b16 %v1476
    %v1518 = vunpack.c.l.b16 %v1477
    %v1519 = vunpack.c.l.b16 %v1478
    %v1520 = vunpack.c.l.b16 %v1479
    %v1521 = vunpack.c.l.b16 %v1480
    %v1522 = vunpack.c.l.b16 %v1481
    %v1523 = vunpack.c.l.b16 %v1482
    %v1524 = vunpack.c.l.b16 %v1483
    %v1525 = vunpack.c.l.b16 %v1484
    %v1526 = vunpack.c.l.b16 %v1485
    %v1527 = vunpack.c.l.b16 %v1486
    %v1528 = vunpack.c.l.b16 %v1487
    %v1529 = vunpack.c.l.b16 %v1488
    %v1530 = vunpack.c.l.b16 %v1489
    %v1531 = vunpack.c.l.b16 %v1490
    %v1532 = vunpack.c.l.b16 %v1491
    %v1533 = vpack.c.b16 %v1518, %v1517
    %v1534 = vpack.c.b16 %v1520, %v1519
    %v1535 = vpack.c.b16 %v1522, %v1521
    %v1536 = vpack.c.b16 %v1524, %v1523
    %v1537 = vpack.c.b16 %v1526, %v1525
    %v1538 = vpack.c.b16 %v1528, %v1527
    %v1539 = vpack.c.b16 %v1530, %v1529
    %v1540 = vpack.c.b16 %v1532, %v1531
    %1549 = vmatprep.subr.bf16.mxu0 0
    %1550 = vmatpush1.bf16.msra.mxu0 %v1533
    %1551 = vmatprep.subr.bf16.mxu0 0
    %1552 = vmatpush1.bf16.msra.mxu0 %v1534
    %1553 = vmatprep.subr.bf16.mxu0 0
    %1554 = vmatpush1.bf16.msra.mxu0 %v1535
    %1555 = vmatprep.subr.bf16.mxu0 0
    %1556 = vmatpush1.bf16.msra.mxu0 %v1536
    %1557 = vmatprep.subr.bf16.mxu0 0
    %1558 = vmatpush1.bf16.msra.mxu0 %v1537
    %1559 = vmatprep.subr.bf16.mxu0 0
    %1560 = vmatpush1.bf16.msra.mxu0 %v1538
    %1561 = vmatprep.subr.bf16.mxu0 0
    %1562 = vmatpush1.bf16.msra.mxu0 %v1539
    %1563 = vmatprep.subr.bf16.mxu0 0
    %1564 = vmatpush1.bf16.msra.mxu0 %v1540
    %1565 = vmatprep.subr.bf16.mxu0 0
    %1566 = vmatpush1.bf16.msra.mxu0 0
    %1567 = vmatprep.subr.bf16.mxu0 0
    %1568 = vmatpush1.bf16.msra.mxu0 0
    %1569 = vmatprep.subr.bf16.mxu0 0
    %1570 = vmatpush1.bf16.msra.mxu0 0
    %1571 = vmatprep.subr.bf16.mxu0 0
    %1572 = vmatpush1.bf16.msra.mxu0 0
    %1573 = vmatprep.subr.bf16.mxu0 0
    %1574 = vmatpush1.bf16.msra.mxu0 0
    %1575 = vmatprep.subr.bf16.mxu0 0
    %1576 = vmatpush1.bf16.msra.mxu0 0
    %1577 = vmatprep.subr.bf16.mxu0 0
    %1578 = vmatpush1.bf16.msra.mxu0 0
    %1579 = vmatprep.subr.bf16.mxu0 0
    %1580 = vmatpush1.bf16.msra.mxu0 0
    %1581 = vmatprep.mubr.bf16.mxu0 0
    %1582 = vmatmul.mubr.bf16.gmra.mrb[0].mxu0 %v1494
    %v1583 = vpop.f32.mrb[0].mxu0
    %v1584 = vadd.f32 %v1499, %v1583
    %v1585 = vpop.f32.mrb[0].mxu0
    %v1586 = vpop.f32.mrb[0].mxu0
    %v1587 = vpop.f32.mrb[0].mxu0
    %1588 = vdwg.mxu0
    %v1589 = vmax.f32 %v1584, 0.0
    %v1590 = vpack.c.bf16 %v1474, %v1474
    %1591 = vmatprep.subr.bf16.mxu0 0
    %1592 = vmatpush1.bf16.msra.mxu0 %v1533
    %1593 = vmatprep.subr.bf16.mxu0 0
    %1594 = vmatpush1.bf16.msra.mxu0 %v1534
    %1595 = vmatprep.subr.bf16.mxu0 0
    %1596 = vmatpush1.bf16.msra.mxu0 %v1535
    %1597 = vmatprep.subr.bf16.mxu0 0
    %1598 = vmatpush1.bf16.msra.mxu0 %v1536
    %1599 = vmatprep.subr.bf16.mxu0 0
    %1600 = vmatpush1.bf16.msra.mxu0 %v1537
    %1601 = vmatprep.subr.bf16.mxu0 0
    %1602 = vmatpush1.bf16.msra.mxu0 %v1538
    %1603 = vmatprep.subr.bf16.mxu0 0
    %1604 = vmatpush1.bf16.msra.mxu0 %v1539
    %1605 = vmatprep.subr.bf16.mxu0 0
    %1606 = vmatpush1.bf16.msra.mxu0 %v1540
    %1607 = vmatprep.subr.bf16.mxu0 0
    %1608 = vmatpush1.bf16.msra.mxu0 0
    %1609 = vmatprep.subr.bf16.mxu0 0
    %1610 = vmatpush1.bf16.msra.mxu0 0
    %1611 = vmatprep.subr.bf16.mxu0 0
    %1612 = vmatpush1.bf16.msra.mxu0 0
    %1613 = vmatprep.subr.bf16.mxu0 0
    %1614 = vmatpush1.bf16.msra.mxu0 0
    %1615 = vmatprep.subr.bf16.mxu0 0
    %1616 = vmatpush1.bf16.msra.mxu0 0
    %1617 = vmatprep.subr.bf16.mxu0 0
    %1618 = vmatpush1.bf16.msra.mxu0 0
    %1619 = vmatprep.subr.bf16.mxu0 0
    %1620 = vmatpush1.bf16.msra.mxu0 0
    %1621 = vmatprep.subr.bf16.mxu0 0
    %1622 = vmatpush1.bf16.msra.mxu0 0
    %1623 = vmatprep.mubr.bf16.mxu0 0
    %1624 = vmatmul.mubr.bf16.gmra.mrb[0].mxu0 %v1590
    %v1625 = vpop.f32.mrb[0].mxu0
    %v1626 = vadd.f32 %v1499, %v1625
    %v1627 = vpop.f32.mrb[0].mxu0
    %v1628 = vpop.f32.mrb[0].mxu0
    %v1629 = vpop.f32.mrb[0].mxu0
    %1630 = vdwg.mxu0
    %v1631 = vmax.f32 %v1626, 0.0
    %s1632 = scalar_lea.vmem [#allocation2], 576
    %v1633 = vld [vmem:[%s1632] sm:$0xf]
    %v1634 = vld [vmem:[%s1632 + $0x4] sm:$0xf]
    %v1635 = vld [vmem:[%s1632 + $0x8] sm:$0xf]
    %v1636 = vld [vmem:[%s1632 + $0xc] sm:$0xf]
    %v1637 = vld [vmem:[%s1632 + $0x10] sm:$0xf]
    %v1638 = vld [vmem:[%s1632 + $0x14] sm:$0xf]
    %v1639 = vld [vmem:[%s1632 + $0x18] sm:$0xf]
    %v1640 = vld [vmem:[%s1632 + $0x1c] sm:$0xf]
    %v1641 = vld [vmem:[%s1632 + $0x20] sm:$0xf]
    %v1642 = vld [vmem:[%s1632 + $0x24] sm:$0xf]
    %v1643 = vld [vmem:[%s1632 + $0x28] sm:$0xf]
    %v1644 = vld [vmem:[%s1632 + $0x2c] sm:$0xf]
    %v1645 = vld [vmem:[%s1632 + $0x30] sm:$0xf]
    %v1646 = vld [vmem:[%s1632 + $0x34] sm:$0xf]
    %v1647 = vld [vmem:[%s1632 + $0x38] sm:$0xf]
    %v1648 = vld [vmem:[%s1632 + $0x3c] sm:$0xf]
    %s1649 = scalar_lea.vmem %s4, 9
    %v1650 = vld [vmem:[%s1649] sm:$0x1]
    %v1651 = vpack.c.bf16 %v1589, %v1589
    %v1653 = vlaneseq
    %v1654 = vshrl.u32 %v1653, 7
    %v1655 = vsub.s32 0, %v1654
    %v1656 = vrot.slane %v1650, %v1655
    %v1674 = vunpack.c.l.b16 %v1633
    %v1675 = vunpack.c.l.b16 %v1634
    %v1676 = vunpack.c.l.b16 %v1635
    %v1677 = vunpack.c.l.b16 %v1636
    %v1678 = vunpack.c.l.b16 %v1637
    %v1679 = vunpack.c.l.b16 %v1638
    %v1680 = vunpack.c.l.b16 %v1639
    %v1681 = vunpack.c.l.b16 %v1640
    %v1682 = vunpack.c.l.b16 %v1641
    %v1683 = vunpack.c.l.b16 %v1642
    %v1684 = vunpack.c.l.b16 %v1643
    %v1685 = vunpack.c.l.b16 %v1644
    %v1686 = vunpack.c.l.b16 %v1645
    %v1687 = vunpack.c.l.b16 %v1646
    %v1688 = vunpack.c.l.b16 %v1647
    %v1689 = vunpack.c.l.b16 %v1648
    %v1690 = vpack.c.b16 %v1675, %v1674
    %v1691 = vpack.c.b16 %v1677, %v1676
    %v1692 = vpack.c.b16 %v1679, %v1678
    %v1693 = vpack.c.b16 %v1681, %v1680
    %v1694 = vpack.c.b16 %v1683, %v1682
    %v1695 = vpack.c.b16 %v1685, %v1684
    %v1696 = vpack.c.b16 %v1687, %v1686
    %v1697 = vpack.c.b16 %v1689, %v1688
    %1706 = vmatprep.subr.bf16.mxu0 0
    %1707 = vmatpush1.bf16.msra.mxu0 %v1690
    %1708 = vmatprep.subr.bf16.mxu0 0
    %1709 = vmatpush1.bf16.msra.mxu0 %v1691
    %1710 = vmatprep.subr.bf16.mxu0 0
    %1711 = vmatpush1.bf16.msra.mxu0 %v1692
    %1712 = vmatprep.subr.bf16.mxu0 0
    %1713 = vmatpush1.bf16.msra.mxu0 %v1693
    %1714 = vmatprep.subr.bf16.mxu0 0
    %1715 = vmatpush1.bf16.msra.mxu0 %v1694
    %1716 = vmatprep.subr.bf16.mxu0 0
    %1717 = vmatpush1.bf16.msra.mxu0 %v1695
    %1718 = vmatprep.subr.bf16.mxu0 0
    %1719 = vmatpush1.bf16.msra.mxu0 %v1696
    %1720 = vmatprep.subr.bf16.mxu0 0
    %1721 = vmatpush1.bf16.msra.mxu0 %v1697
    %1722 = vmatprep.subr.bf16.mxu0 0
    %1723 = vmatpush1.bf16.msra.mxu0 0
    %1724 = vmatprep.subr.bf16.mxu0 0
    %1725 = vmatpush1.bf16.msra.mxu0 0
    %1726 = vmatprep.subr.bf16.mxu0 0
    %1727 = vmatpush1.bf16.msra.mxu0 0
    %1728 = vmatprep.subr.bf16.mxu0 0
    %1729 = vmatpush1.bf16.msra.mxu0 0
    %1730 = vmatprep.subr.bf16.mxu0 0
    %1731 = vmatpush1.bf16.msra.mxu0 0
    %1732 = vmatprep.subr.bf16.mxu0 0
    %1733 = vmatpush1.bf16.msra.mxu0 0
    %1734 = vmatprep.subr.bf16.mxu0 0
    %1735 = vmatpush1.bf16.msra.mxu0 0
    %1736 = vmatprep.subr.bf16.mxu0 0
    %1737 = vmatpush1.bf16.msra.mxu0 0
    %1738 = vmatprep.mubr.bf16.mxu0 0
    %1739 = vmatmul.mubr.bf16.gmra.mrb[0].mxu0 %v1651
    %v1740 = vpop.f32.mrb[0].mxu0
    %v1741 = vadd.f32 %v1656, %v1740
    %v1742 = vpop.f32.mrb[0].mxu0
    %v1743 = vpop.f32.mrb[0].mxu0
    %v1744 = vpop.f32.mrb[0].mxu0
    %1745 = vdwg.mxu0
    %v1746 = vmax.f32 %v1741, 0.0
    %v1747 = vpack.c.bf16 %v1631, %v1631
    %1748 = vmatprep.subr.bf16.mxu0 0
    %1749 = vmatpush1.bf16.msra.mxu0 %v1690
    %1750 = vmatprep.subr.bf16.mxu0 0
    %1751 = vmatpush1.bf16.msra.mxu0 %v1691
    %1752 = vmatprep.subr.bf16.mxu0 0
    %1753 = vmatpush1.bf16.msra.mxu0 %v1692
    %1754 = vmatprep.subr.bf16.mxu0 0
    %1755 = vmatpush1.bf16.msra.mxu0 %v1693
    %1756 = vmatprep.subr.bf16.mxu0 0
    %1757 = vmatpush1.bf16.msra.mxu0 %v1694
    %1758 = vmatprep.subr.bf16.mxu0 0
    %1759 = vmatpush1.bf16.msra.mxu0 %v1695
    %1760 = vmatprep.subr.bf16.mxu0 0
    %1761 = vmatpush1.bf16.msra.mxu0 %v1696
    %1762 = vmatprep.subr.bf16.mxu0 0
    %1763 = vmatpush1.bf16.msra.mxu0 %v1697
    %1764 = vmatprep.subr.bf16.mxu0 0
    %1765 = vmatpush1.bf16.msra.mxu0 0
    %1766 = vmatprep.subr.bf16.mxu0 0
    %1767 = vmatpush1.bf16.msra.mxu0 0
    %1768 = vmatprep.subr.bf16.mxu0 0
    %1769 = vmatpush1.bf16.msra.mxu0 0
    %1770 = vmatprep.subr.bf16.mxu0 0
    %1771 = vmatpush1.bf16.msra.mxu0 0
    %1772 = vmatprep.subr.bf16.mxu0 0
    %1773 = vmatpush1.bf16.msra.mxu0 0
    %1774 = vmatprep.subr.bf16.mxu0 0
    %1775 = vmatpush1.bf16.msra.mxu0 0
    %1776 = vmatprep.subr.bf16.mxu0 0
    %1777 = vmatpush1.bf16.msra.mxu0 0
    %1778 = vmatprep.subr.bf16.mxu0 0
    %1779 = vmatpush1.bf16.msra.mxu0 0
    %1780 = vmatprep.mubr.bf16.mxu0 0
    %1781 = vmatmul.mubr.bf16.gmra.mrb[0].mxu0 %v1747
    %v1782 = vpop.f32.mrb[0].mxu0
    %v1783 = vadd.f32 %v1656, %v1782
    %v1784 = vpop.f32.mrb[0].mxu0
    %v1785 = vpop.f32.mrb[0].mxu0
    %v1786 = vpop.f32.mrb[0].mxu0
    %1787 = vdwg.mxu0
    %v1788 = vmax.f32 %v1783, 0.0
    %v1789 = vld [vmem:[#allocation5] sm:$0xf]
    %v1790 = vld [vmem:[#allocation5 + $0x4] sm:$0xf]
    %v1791 = vld [vmem:[#allocation5 + $0x8] sm:$0xf]
    %v1792 = vld [vmem:[#allocation5 + $0xc] sm:$0xf]
    %v1793 = vld [vmem:[#allocation5 + $0x10] sm:$0xf]
    %v1794 = vld [vmem:[#allocation5 + $0x14] sm:$0xf]
    %v1795 = vld [vmem:[#allocation5 + $0x18] sm:$0xf]
    %v1796 = vld [vmem:[#allocation5 + $0x1c] sm:$0xf]
    %v1797 = vld [vmem:[#allocation5 + $0x20] sm:$0xf]
    %v1798 = vld [vmem:[#allocation5 + $0x24] sm:$0xf]
    %v1799 = vld [vmem:[#allocation5 + $0x28] sm:$0xf]
    %v1800 = vld [vmem:[#allocation5 + $0x2c] sm:$0xf]
    %v1801 = vld [vmem:[#allocation5 + $0x30] sm:$0xf]
    %v1802 = vld [vmem:[#allocation5 + $0x34] sm:$0xf]
    %v1803 = vld [vmem:[#allocation5 + $0x38] sm:$0xf]
    %v1804 = vld [vmem:[#allocation5 + $0x3c] sm:$0xf]
    %v1805 = vld [vmem:[%s6] sm:$0x1]
    %v1806 = vpack.c.bf16 %v1746, %v1746
    %v1808 = vlaneseq
    %v1809 = vshrl.u32 %v1808, 7
    %v1810 = vsub.s32 0, %v1809
    %v1811 = vrot.slane %v1805, %v1810
    %v1829 = vunpack.c.l.b16 %v1789
    %v1830 = vunpack.c.l.b16 %v1790
    %v1831 = vunpack.c.l.b16 %v1791
    %v1832 = vunpack.c.l.b16 %v1792
    %v1833 = vunpack.c.l.b16 %v1793
    %v1834 = vunpack.c.l.b16 %v1794
    %v1835 = vunpack.c.l.b16 %v1795
    %v1836 = vunpack.c.l.b16 %v1796
    %v1837 = vunpack.c.l.b16 %v1797
    %v1838 = vunpack.c.l.b16 %v1798
    %v1839 = vunpack.c.l.b16 %v1799
    %v1840 = vunpack.c.l.b16 %v1800
    %v1841 = vunpack.c.l.b16 %v1801
    %v1842 = vunpack.c.l.b16 %v1802
    %v1843 = vunpack.c.l.b16 %v1803
    %v1844 = vunpack.c.l.b16 %v1804
    %v1845 = vpack.c.b16 %v1830, %v1829
    %v1846 = vpack.c.b16 %v1832, %v1831
    %v1847 = vpack.c.b16 %v1834, %v1833
    %v1848 = vpack.c.b16 %v1836, %v1835
    %v1849 = vpack.c.b16 %v1838, %v1837
    %v1850 = vpack.c.b16 %v1840, %v1839
    %v1851 = vpack.c.b16 %v1842, %v1841
    %v1852 = vpack.c.b16 %v1844, %v1843
    %1861 = vmatprep.subr.bf16.mxu0 0
    %1862 = vmatpush1.bf16.msra.mxu0 %v1845
    %1863 = vmatprep.subr.bf16.mxu0 0
    %1864 = vmatpush1.bf16.msra.mxu0 %v1846
    %1865 = vmatprep.subr.bf16.mxu0 0
    %1866 = vmatpush1.bf16.msra.mxu0 %v1847
    %1867 = vmatprep.subr.bf16.mxu0 0
    %1868 = vmatpush1.bf16.msra.mxu0 %v1848
    %1869 = vmatprep.subr.bf16.mxu0 0
    %1870 = vmatpush1.bf16.msra.mxu0 %v1849
    %1871 = vmatprep.subr.bf16.mxu0 0
    %1872 = vmatpush1.bf16.msra.mxu0 %v1850
    %1873 = vmatprep.subr.bf16.mxu0 0
    %1874 = vmatpush1.bf16.msra.mxu0 %v1851
    %1875 = vmatprep.subr.bf16.mxu0 0
    %1876 = vmatpush1.bf16.msra.mxu0 %v1852
    %1877 = vmatprep.subr.bf16.mxu0 0
    %1878 = vmatpush1.bf16.msra.mxu0 0
    %1879 = vmatprep.subr.bf16.mxu0 0
    %1880 = vmatpush1.bf16.msra.mxu0 0
    %1881 = vmatprep.subr.bf16.mxu0 0
    %1882 = vmatpush1.bf16.msra.mxu0 0
    %1883 = vmatprep.subr.bf16.mxu0 0
    %1884 = vmatpush1.bf16.msra.mxu0 0
    %1885 = vmatprep.subr.bf16.mxu0 0
    %1886 = vmatpush1.bf16.msra.mxu0 0
    %1887 = vmatprep.subr.bf16.mxu0 0
    %1888 = vmatpush1.bf16.msra.mxu0 0
    %1889 = vmatprep.subr.bf16.mxu0 0
    %1890 = vmatpush1.bf16.msra.mxu0 0
    %1891 = vmatprep.subr.bf16.mxu0 0
    %1892 = vmatpush1.bf16.msra.mxu0 0
    %1893 = vmatprep.mubr.bf16.mxu0 0
    %1894 = vmatmul.mubr.bf16.gmra.mrb[0].mxu0 %v1806
    %v1895 = vpop.f32.mrb[0].mxu0
    %v1896 = vadd.f32 %v1811, %v1895
    %v1897 = vpop.f32.mrb[0].mxu0
    %v1898 = vpop.f32.mrb[0].mxu0
    %v1899 = vpop.f32.mrb[0].mxu0
    %1900 = vdwg.mxu0
    %v1901 = vpack.c.bf16 %v1788, %v1788
    %1902 = vmatprep.subr.bf16.mxu0 0
    %1903 = vmatpush1.bf16.msra.mxu0 %v1845
    %1904 = vmatprep.subr.bf16.mxu0 0
    %1905 = vmatpush1.bf16.msra.mxu0 %v1846
    %1906 = vmatprep.subr.bf16.mxu0 0
    %1907 = vmatpush1.bf16.msra.mxu0 %v1847
    %1908 = vmatprep.subr.bf16.mxu0 0
    %1909 = vmatpush1.bf16.msra.mxu0 %v1848
    %1910 = vmatprep.subr.bf16.mxu0 0
    %1911 = vmatpush1.bf16.msra.mxu0 %v1849
    %1912 = vmatprep.subr.bf16.mxu0 0
    %1913 = vmatpush1.bf16.msra.mxu0 %v1850
    %1914 = vmatprep.subr.bf16.mxu0 0
    %1915 = vmatpush1.bf16.msra.mxu0 %v1851
    %1916 = vmatprep.subr.bf16.mxu0 0
    %1917 = vmatpush1.bf16.msra.mxu0 %v1852
    %1918 = vmatprep.subr.bf16.mxu0 0
    %1919 = vmatpush1.bf16.msra.mxu0 0
    %1920 = vmatprep.subr.bf16.mxu0 0
    %1921 = vmatpush1.bf16.msra.mxu0 0
    %1922 = vmatprep.subr.bf16.mxu0 0
    %1923 = vmatpush1.bf16.msra.mxu0 0
    %1924 = vmatprep.subr.bf16.mxu0 0
    %1925 = vmatpush1.bf16.msra.mxu0 0
    %1926 = vmatprep.subr.bf16.mxu0 0
    %1927 = vmatpush1.bf16.msra.mxu0 0
    %1928 = vmatprep.subr.bf16.mxu0 0
    %1929 = vmatpush1.bf16.msra.mxu0 0
    %1930 = vmatprep.subr.bf16.mxu0 0
    %1931 = vmatpush1.bf16.msra.mxu0 0
    %1932 = vmatprep.subr.bf16.mxu0 0
    %1933 = vmatpush1.bf16.msra.mxu0 0
    %1934 = vmatprep.mubr.bf16.mxu0 0
    %1935 = vmatmul.mubr.bf16.gmra.mrb[0].mxu0 %v1901
    %v1936 = vpop.f32.mrb[0].mxu0
    %v1937 = vadd.f32 %v1811, %v1936
    %v1938 = vpop.f32.mrb[0].mxu0
    %v1939 = vpop.f32.mrb[0].mxu0
    %v1940 = vpop.f32.mrb[0].mxu0
    %1941 = vdwg.mxu0
    %1942 = vst [vmem:[#allocation7] sm:$0xff] %v1896
    %1943 = vst [vmem:[#allocation7 + $0x8] sm:$0xff] %v1937
    // Predicated region
    $region38: #{pinn_forward.1} parent=1 // pred_check
      _
    $region39: #{pinn_forward.1} parent=1 // pred_check_branch
      %1945 = sbr.rel (0) target = $region41
    $region40: #{pinn_forward.1} parent=1 // pred_region
      %s1947 = ssub.s32 256, 256
      %1948 = vsyncadd [#allocation4], %s1947
      %s1949 = sshll.u32 [#allocation7], 4
      %s1950 = int_to_ptr.vmem [resolvable:$true] %s1949
      %1955 = dma.vmem_to_hbm [thread:$0]  %s1950, 256, %s7, [#allocation4], 128, 128, 8
    $region41: #{pinn_forward.1} parent=1 // pred_fallthru
      _
    // Predicated region
    $region42: #{pinn_forward.1} parent=1 // pred_check
      _
    $region43: #{pinn_forward.1} parent=1 // pred_check_branch
      %1957 = sbr.rel (0) target = $region45
    $region44: #{pinn_forward.1} parent=1 // pred_region
      %1958 = dma.done [#allocation4], 256
    $region45: #{pinn_forward.1} parent=1 // pred_fallthru
      _
    %1959 = vsyncpa [#allocation3], 1
    %1960 = vsyncpa [#allocation6], 1
    %1961 = vsyncpa [#allocation4], 1

</llo_original>
